<compile_context>
chip_gen: v7x
topology: tpu7x:2x2x1
jax: 0.10.0
libtpu: 0.0.40
codegen_flags: <defaults>
</compile_context>

<pallas_src>
import functools

import jax
import jax.numpy as jnp
from jax.experimental import pallas as pl
from jax.experimental.pallas import tpu as pltpu


def _sdpa_kernel(*refs, scale, has_prev, has_attn_mask, has_kpm, emit_scores):
    # Inputs : q (bb,q,d_k), k (bb,d_k,s), v (bb,s,d_v),
    #          [prev (bb,q,s)], [attn_mask (1,q,s) f32], [kpm (bb,1,s) f32]
    # Outputs: out (bb,q,d_v), attn (bb,q,s), [scores (bb,q,s)]
    it = iter(refs)
    q_ref = next(it)
    k_ref = next(it)
    v_ref = next(it)
    prev_ref = next(it) if has_prev else None
    am_ref = next(it) if has_attn_mask else None
    kpm_ref = next(it) if has_kpm else None
    out_ref = next(it)
    attn_ref = next(it)
    scores_ref = next(it) if emit_scores else None

    # Fold the scale into q (d_k-wide tensor, not seq_len-wide); f32 compute.
    q = q_ref[...].astype(jnp.float32) * scale
    k = k_ref[...].astype(jnp.float32)

    # attn_scores = (q*scale) @ k [+ prev + attn_mask + key_padding_mask]
    scores = jnp.einsum("bqd,bds->bqs", q, k,
                        preferred_element_type=jnp.float32)
    if has_prev:
        scores = scores + prev_ref[...].astype(jnp.float32)
    if has_attn_mask:
        scores = scores + am_ref[...]          # (1,q,s) broadcasts over bb
    if has_kpm:
        scores = scores + kpm_ref[...]         # (bb,1,s) broadcasts over q
    if emit_scores:
        scores_ref[...] = scores.astype(scores_ref.dtype)

    # Numerically-stable softmax over seq_len (f32).  Exact normalization so
    # the emitted attention weights sum to 1 (they feed the next layer when
    # residual attention is enabled).
    m = jnp.max(scores, axis=-1, keepdims=True)
    e = jnp.exp(scores - m)
    denom = jnp.sum(e, axis=-1, keepdims=True)
    attn = e / denom
    attn_ref[...] = attn.astype(attn_ref.dtype)

    # TODO(synk): attn_dropout is identity at inference (p=0.0); no RNG applied.
    out = jnp.einsum("bqs,bsd->bqd", attn, v_ref[...].astype(jnp.float32),
                     preferred_element_type=jnp.float32)
    out_ref[...] = out.astype(out_ref.dtype)


def _pad_last2_elems(rows, cols):
    """Element count of a (rows, cols) f32 tile after (8,128) VMEM padding."""
    return (-(-rows // 8) * 8) * (-(-cols // 128) * 128)


def _choose_block_b(B, q_len, seq_len, d_k, d_v, has_prev, has_kpm,
                    emit_scores, vmem_cap):
    """Pick the batch block so per-step (double-buffered) VMEM use stays small."""
    per_b = 4 * (
        _pad_last2_elems(q_len, d_k)                         # q
        + _pad_last2_elems(d_k, seq_len)                     # k
        + _pad_last2_elems(seq_len, d_v)                     # v
        + (_pad_last2_elems(q_len, seq_len) if has_prev else 0)
        + (_pad_last2_elems(1, seq_len) if has_kpm else 0)
        + _pad_last2_elems(q_len, d_v)                       # out
        + _pad_last2_elems(q_len, seq_len) * (2 if emit_scores else 1))
    # 2x for double-buffered pipeline buffers, plus ~3 score-sized f32 live
    # intermediates (scores / exp / attn) inside the kernel.
    per_b_total = 2 * per_b + 3 * 4 * _pad_last2_elems(q_len, seq_len)
    bb = max(1, min(B, (vmem_cap // 4) // per_b_total))
    # Prefer >= 8 grid steps when there is enough batch (pipeline depth, and
    # >= 2 chunks per TensorCore on v7x megacore).
    if B >= 64:
        bb = min(bb, -(-B // 8))
    if bb < B and bb >= 8:
        bb = (bb // 8) * 8          # multiple-of-8 leading blocks
    return bb


def _pad_leading(x, target):
    if x.shape[0] == target:
        return x
    pad = [(0, target - x.shape[0])] + [(0, 0)] * (x.ndim - 1)
    return jnp.pad(x, pad)


def scaled_dot_product_attention(q, k, v, scale, prev=None,
                                 key_padding_mask=None, attn_mask=None,
                                 res_attention=False):
    """Mirror of _ScaledDotProductAttention.forward.

    q: [bs, n_heads, q_len, d_k]      k: [bs, n_heads, d_k, seq_len]
    v: [bs, n_heads, seq_len, d_v]    prev: [bs, n_heads, q_len, seq_len]
    key_padding_mask: [bs, seq_len] (True = masked)
    attn_mask: [1|, q_len, seq_len] (bool True = masked, or additive float)
    """
    bs, n_heads, q_len, d_k = q.shape
    seq_len = k.shape[-1]
    d_v = v.shape[-1]
    B = bs * n_heads

    has_prev = prev is not None
    has_attn_mask = attn_mask is not None
    has_kpm = key_padding_mask is not None
    emit_scores = bool(res_attention)

    out_dtype = q.dtype

    # Inputs keep their original dtype; any casting happens on the VPU
    # in-kernel (no extra wrapper-side read+write pass over q/k/v).
    args = [q.reshape(B, q_len, d_k),
            k.reshape(B, d_k, seq_len),
            v.reshape(B, seq_len, d_v)]

    if has_prev:
        args.append(prev.reshape(B, q_len, seq_len))

    if has_attn_mask:
        am = attn_mask
        if am.dtype == jnp.bool_:
            am = jnp.where(am, -jnp.inf, 0.0).astype(jnp.float32)
        else:
            am = am.astype(jnp.float32)
        args.append(am.reshape(1, q_len, seq_len))

    if has_kpm:
        kpm = jnp.where(key_padding_mask.astype(jnp.bool_), -jnp.inf, 0.0)
        kpm = kpm.astype(jnp.float32)                          # [bs, seq_len]
        kpm = jnp.broadcast_to(kpm[:, None, None, :],
                               (bs, n_heads, 1, seq_len)).reshape(B, 1, seq_len)
        args.append(kpm)

    # Generation-aware VMEM budget (v5e/v6e: 128 MiB, v7x: 64 MiB).
    try:
        vmem_cap = int(pltpu.get_tpu_info().vmem_capacity_bytes)
    except Exception:
        vmem_cap = 64 << 20

    bb = _choose_block_b(B, q_len, seq_len, d_k, d_v, has_prev, has_kpm,
                         emit_scores, vmem_cap)
    nb = -(-B // bb)
    B_pad = nb * bb
    if B_pad != B:
        # Ragged last block: pad B with zero rows (softmax of zeros is finite),
        # slice the padded rows away afterwards.
        args = [_pad_leading(a, B_pad) if a.shape[0] == B else a for a in args]

    in_specs = [
        pl.BlockSpec((bb, q_len, d_k), lambda b: (b, 0, 0)),
        pl.BlockSpec((bb, d_k, seq_len), lambda b: (b, 0, 0)),
        pl.BlockSpec((bb, seq_len, d_v), lambda b: (b, 0, 0)),
    ]
    if has_prev:
        in_specs.append(pl.BlockSpec((bb, q_len, seq_len), lambda b: (b, 0, 0)))
    if has_attn_mask:
        in_specs.append(pl.BlockSpec((1, q_len, seq_len), lambda b: (0, 0, 0)))
    if has_kpm:
        in_specs.append(pl.BlockSpec((bb, 1, seq_len), lambda b: (b, 0, 0)))

    out_shapes = [jax.ShapeDtypeStruct((B_pad, q_len, d_v), out_dtype),
                  jax.ShapeDtypeStruct((B_pad, q_len, seq_len), out_dtype)]
    out_specs = [pl.BlockSpec((bb, q_len, d_v), lambda b: (b, 0, 0)),
                 pl.BlockSpec((bb, q_len, seq_len), lambda b: (b, 0, 0))]
    if emit_scores:
        out_shapes.append(jax.ShapeDtypeStruct((B_pad, q_len, seq_len), out_dtype))
        out_specs.append(pl.BlockSpec((bb, q_len, seq_len), lambda b: (b, 0, 0)))

    vmem_limit = int(max(32 << 20, min(vmem_cap // 2, 64 << 20)))

    kernel = functools.partial(_sdpa_kernel, scale=float(scale),
                               has_prev=has_prev, has_attn_mask=has_attn_mask,
                               has_kpm=has_kpm, emit_scores=emit_scores)

    results = pl.pallas_call(
        kernel,
        out_shape=tuple(out_shapes),
        grid_spec=pltpu.PrefetchScalarGridSpec(
            num_scalar_prefetch=0,
            grid=(nb,),
            in_specs=in_specs,
            out_specs=out_specs,
        ),
        compiler_params=pltpu.CompilerParams(
            dimension_semantics=("parallel",),
            vmem_limit_bytes=vmem_limit),
    )(*args)

    out = results[0][:B].reshape(bs, n_heads, q_len, d_v)
    attn = results[1][:B].reshape(bs, n_heads, q_len, seq_len)
    if res_attention:
        scores = results[2][:B].reshape(bs, n_heads, q_len, seq_len)
        return out, attn, scores
    return out, attn


if __name__ == "__main__":
    # Module hyper-parameters (deterministic, no checkpoint).
    d_model = 32
    n_heads = 4
    head_dim = d_model // n_heads           # d_k = d_v = 8
    scale = head_dim ** (-0.5)              # nn.Parameter init (lsa=False -> frozen)

    bs, q_len, seq_len, d_k, d_v = 2, 8, 8, head_dim, head_dim

    key = jax.random.PRNGKey(0)
    kq, kk, kv, kp = jax.random.split(key, 4)
    q = jax.random.normal(kq, (bs, n_heads, q_len, d_k), dtype=jnp.float32)
    k = jax.random.normal(kk, (bs, n_heads, d_k, seq_len), dtype=jnp.float32)
    v = jax.random.normal(kv, (bs, n_heads, seq_len, d_v), dtype=jnp.float32)
    prev = 0.1 * jax.random.normal(kp, (bs, n_heads, q_len, seq_len),
                                   dtype=jnp.float32)

    hi = jax.lax.Precision.HIGHEST

    # ---- Path 1: residual attention (prev present, scores emitted). ----
    out, attn, scores = scaled_dot_product_attention(
        q, k, v, scale, prev=prev, res_attention=True)
    jax.block_until_ready((out, attn, scores))

    ref_scores = jnp.einsum("bhqd,bhds->bhqs", q, k, precision=hi) * scale + prev
    ref_attn = jax.nn.softmax(ref_scores, axis=-1)
    ref_out = jnp.einsum("bhqs,bhsd->bhqd", ref_attn, v, precision=hi)
    assert jnp.allclose(scores, ref_scores, atol=2e-2, rtol=2e-2), "scores mismatch"
    assert jnp.allclose(attn, ref_attn, atol=2e-2, rtol=2e-2), "attn mismatch"
    assert jnp.allclose(out, ref_out, atol=2e-2, rtol=2e-2), "output mismatch"

    # ---- Path 2: plain attention (no prev / masks, no scores output). ----
    out2, attn2 = scaled_dot_product_attention(q, k, v, scale)
    jax.block_until_ready((out2, attn2))

    ref_scores2 = jnp.einsum("bhqd,bhds->bhqs", q, k, precision=hi) * scale
    ref_attn2 = jax.nn.softmax(ref_scores2, axis=-1)
    ref_out2 = jnp.einsum("bhqs,bhsd->bhqd", ref_attn2, v, precision=hi)
    assert jnp.allclose(attn2, ref_attn2, atol=2e-2, rtol=2e-2), "attn2 mismatch"
    assert jnp.allclose(out2, ref_out2, atol=2e-2, rtol=2e-2), "output2 mismatch"

    # ---- Path 3: boolean attn_mask (causal) + key_padding_mask. ----
    causal = jnp.triu(jnp.ones((q_len, seq_len), dtype=jnp.bool_), k=1)
    attn_mask = causal[None]                                  # [1, q_len, seq_len]
    key_padding_mask = jnp.zeros((bs, seq_len), dtype=jnp.bool_)
    key_padding_mask = key_padding_mask.at[:, seq_len - 2:].set(True)

    out3, attn3 = scaled_dot_product_attention(
        q, k, v, scale, key_padding_mask=key_padding_mask, attn_mask=attn_mask)
    jax.block_until_ready((out3, attn3))

    ref_scores3 = jnp.einsum("bhqd,bhds->bhqs", q, k, precision=hi) * scale
    ref_scores3 = jnp.where(attn_mask[None], -jnp.inf, ref_scores3)
    ref_scores3 = jnp.where(key_padding_mask[:, None, None, :], -jnp.inf, ref_scores3)
    ref_attn3 = jax.nn.softmax(ref_scores3, axis=-1)
    ref_out3 = jnp.einsum("bhqs,bhsd->bhqd", ref_attn3, v, precision=hi)
    assert jnp.allclose(attn3, ref_attn3, atol=2e-2, rtol=2e-2), "attn3 mismatch"
    assert jnp.allclose(out3, ref_out3, atol=2e-2, rtol=2e-2), "output3 mismatch"

    print("KERNEL_OK")
</pallas_src>

<mosaic_0001>
module attributes {stable_mosaic.version = 11 : i64} {
  func.func @_sdpa_kernel(%arg0: i32, %arg1: memref<8x8x8xf32, #tpu.memory_space<vmem>>, %arg2: memref<8x8x8xf32, #tpu.memory_space<vmem>>, %arg3: memref<8x8x8xf32, #tpu.memory_space<vmem>>, %arg4: memref<8x8x8xf32, #tpu.memory_space<vmem>>, %arg5: memref<8x8x8xf32, #tpu.memory_space<vmem>>, %arg6: memref<8x8x8xf32, #tpu.memory_space<vmem>>, %arg7: memref<8x8x8xf32, #tpu.memory_space<vmem>>) attributes {dimension_semantics = [#tpu.dimension_semantics<parallel>], iteration_bounds = array<i64: 1>, scalar_prefetch = 0 : i64, scratch_operands = 0 : i64, tpu.core_type = #tpu.core_type<tc>, window_params = [{transform_indices = @transform_0, window_bounds = array<i64: 8, 8, 8>}, {transform_indices = @transform_1, window_bounds = array<i64: 8, 8, 8>}, {transform_indices = @transform_2, window_bounds = array<i64: 8, 8, 8>}, {transform_indices = @transform_3, window_bounds = array<i64: 8, 8, 8>}, {transform_indices = @transform_4, window_bounds = array<i64: 8, 8, 8>}, {transform_indices = @transform_5, window_bounds = array<i64: 8, 8, 8>}, {transform_indices = @transform_6, window_bounds = array<i64: 8, 8, 8>}]} {
    %c0 = arith.constant 0 : index
    %c0_0 = arith.constant 0 : index
    %c0_1 = arith.constant 0 : index
    %0 = vector.load %arg1[%c0, %c0_0, %c0_1] : memref<8x8x8xf32, #tpu.memory_space<vmem>>, vector<8x8x8xf32>
    %cst = arith.constant 0.353553385 : f32
    %1 = vector.broadcast %cst : f32 to vector<8x8x8xf32>
    %2 = arith.mulf %0, %1 : vector<8x8x8xf32>
    %c0_2 = arith.constant 0 : index
    %c0_3 = arith.constant 0 : index
    %c0_4 = arith.constant 0 : index
    %3 = vector.load %arg2[%c0_2, %c0_3, %c0_4] : memref<8x8x8xf32, #tpu.memory_space<vmem>>, vector<8x8x8xf32>
    "tpu.trace_start"() <{level = 10 : i32, message = "bqd,bds->bqs"}> : () -> ()
    %cst_5 = arith.constant dense<0.000000e+00> : vector<8x8x8xf32>
    %4 = tpu.matmul %2, %3, %cst_5 {dimension_numbers = #tpu.dot_dimension_numbers<[2], [1], [1], [2], [0, 0, 0, 1, 1, 2], [0], [0]>} : vector<8x8x8xf32>, vector<8x8x8xf32>, vector<8x8x8xf32> -> vector<8x8x8xf32>
    "tpu.trace_stop"() : () -> ()
    %c0_6 = arith.constant 0 : index
    %c0_7 = arith.constant 0 : index
    %c0_8 = arith.constant 0 : index
    %5 = vector.load %arg4[%c0_6, %c0_7, %c0_8] : memref<8x8x8xf32, #tpu.memory_space<vmem>>, vector<8x8x8xf32>
    %6 = arith.addf %4, %5 : vector<8x8x8xf32>
    %c0_9 = arith.constant 0 : index
    %c0_10 = arith.constant 0 : index
    %c0_11 = arith.constant 0 : index
    %7 = vector.load %arg7[%c0_9, %c0_10, %c0_11] : memref<8x8x8xf32, #tpu.memory_space<vmem>>, vector<8x8x8xf32>
    tpu.vector_store %arg7[%c0_9, %c0_10, %c0_11], %6 {strides = array<i32>} : memref<8x8x8xf32, #tpu.memory_space<vmem>>, vector<8x8x8xf32>,
    %cst_12 = arith.constant dense<0xFF800000> : vector<8x8xf32>
    %8 = vector.multi_reduction <maximumf>, %6, %cst_12 [2] : vector<8x8x8xf32> to vector<8x8xf32>
    %9 = vector.shape_cast %8 : vector<8x8xf32> to vector<8x8x1xf32>
    %10 = vector.broadcast %9 : vector<8x8x1xf32> to vector<8x8x8xf32>
    %11 = arith.subf %6, %10 : vector<8x8x8xf32>
    %12 = math.exp %11 : vector<8x8x8xf32>
    %cst_13 = arith.constant dense<0.000000e+00> : vector<8x8xf32>
    %13 = vector.multi_reduction <add>, %12, %cst_13 [2] : vector<8x8x8xf32> to vector<8x8xf32>
    %14 = vector.shape_cast %13 : vector<8x8xf32> to vector<8x8x1xf32>
    %15 = vector.broadcast %14 : vector<8x8x1xf32> to vector<8x8x8xf32>
    %16 = arith.divf %12, %15 : vector<8x8x8xf32>
    %c0_14 = arith.constant 0 : index
    %c0_15 = arith.constant 0 : index
    %c0_16 = arith.constant 0 : index
    %17 = vector.load %arg6[%c0_14, %c0_15, %c0_16] : memref<8x8x8xf32, #tpu.memory_space<vmem>>, vector<8x8x8xf32>
    tpu.vector_store %arg6[%c0_14, %c0_15, %c0_16], %16 {strides = array<i32>} : memref<8x8x8xf32, #tpu.memory_space<vmem>>, vector<8x8x8xf32>,
    %c0_17 = arith.constant 0 : index
    %c0_18 = arith.constant 0 : index
    %c0_19 = arith.constant 0 : index
    %18 = vector.load %arg3[%c0_17, %c0_18, %c0_19] : memref<8x8x8xf32, #tpu.memory_space<vmem>>, vector<8x8x8xf32>
    "tpu.trace_start"() <{level = 10 : i32, message = "bqs,bsd->bqd"}> : () -> ()
    %cst_20 = arith.constant dense<0.000000e+00> : vector<8x8x8xf32>
    %19 = tpu.matmul %16, %18, %cst_20 {dimension_numbers = #tpu.dot_dimension_numbers<[2], [1], [1], [2], [0, 0, 0, 1, 1, 2], [0], [0]>} : vector<8x8x8xf32>, vector<8x8x8xf32>, vector<8x8x8xf32> -> vector<8x8x8xf32>
    "tpu.trace_stop"() : () -> ()
    %c0_21 = arith.constant 0 : index
    %c0_22 = arith.constant 0 : index
    %c0_23 = arith.constant 0 : index
    %20 = vector.load %arg5[%c0_21, %c0_22, %c0_23] : memref<8x8x8xf32, #tpu.memory_space<vmem>>, vector<8x8x8xf32>
    tpu.vector_store %arg5[%c0_21, %c0_22, %c0_23], %19 {strides = array<i32>} : memref<8x8x8xf32, #tpu.memory_space<vmem>>, vector<8x8x8xf32>,
    return
  }
  func.func @transform_0(%arg0: i32) -> (i32, i32, i32) {
    %c0_i32 = arith.constant 0 : i32
    %c0_i32_0 = arith.constant 0 : i32
    %c0_i32_1 = arith.constant 0 : i32
    return %arg0, %c0_i32, %c0_i32_0 : i32, i32, i32
  }
  func.func @transform_1(%arg0: i32) -> (i32, i32, i32) {
    %c0_i32 = arith.constant 0 : i32
    %c0_i32_0 = arith.constant 0 : i32
    %c0_i32_1 = arith.constant 0 : i32
    return %arg0, %c0_i32, %c0_i32_0 : i32, i32, i32
  }
  func.func @transform_2(%arg0: i32) -> (i32, i32, i32) {
    %c0_i32 = arith.constant 0 : i32
    %c0_i32_0 = arith.constant 0 : i32
    %c0_i32_1 = arith.constant 0 : i32
    return %arg0, %c0_i32, %c0_i32_0 : i32, i32, i32
  }
  func.func @transform_3(%arg0: i32) -> (i32, i32, i32) {
    %c0_i32 = arith.constant 0 : i32
    %c0_i32_0 = arith.constant 0 : i32
    %c0_i32_1 = arith.constant 0 : i32
    return %arg0, %c0_i32, %c0_i32_0 : i32, i32, i32
  }
  func.func @transform_4(%arg0: i32) -> (i32, i32, i32) {
    %c0_i32 = arith.constant 0 : i32
    %c0_i32_0 = arith.constant 0 : i32
    %c0_i32_1 = arith.constant 0 : i32
    return %arg0, %c0_i32, %c0_i32_0 : i32, i32, i32
  }
  func.func @transform_5(%arg0: i32) -> (i32, i32, i32) {
    %c0_i32 = arith.constant 0 : i32
    %c0_i32_0 = arith.constant 0 : i32
    %c0_i32_1 = arith.constant 0 : i32
    return %arg0, %c0_i32, %c0_i32_0 : i32, i32, i32
  }
  func.func @transform_6(%arg0: i32) -> (i32, i32, i32) {
    %c0_i32 = arith.constant 0 : i32
    %c0_i32_0 = arith.constant 0 : i32
    %c0_i32_1 = arith.constant 0 : i32
    return %arg0, %c0_i32, %c0_i32_0 : i32, i32, i32
  }
}

</mosaic_0001>

<llo_original>
// kernel: tpu_custom_call.1
$region0: #{tpu_custom_call.1}
  #allocation0 [shape = 'u32[]', space=smem, size = 0x4, offset = 0x4, fixed_abs, tag = 'smem constant byte address 0x4 - core index']
  #allocation1 [shape = 'u32[144,128]{1,0:T(1,128)}', space=vmem, size = 0x12000, scoped, tag = 'internal scratch']
  %s0 = inlined_call_operand.hbm [shape: f32[8,8,8], index: 0, kind: input, shape index: {}]
  %s1 = inlined_call_operand.hbm [shape: f32[8,8,8], index: 1, kind: input, shape index: {}]
  %s2 = inlined_call_operand.hbm [shape: f32[8,8,8], index: 2, kind: input, shape index: {}]
  %s3 = inlined_call_operand.hbm [shape: f32[8,8,8], index: 3, kind: input, shape index: {}]
  %s4 = inlined_call_operand.hbm [shape: f32[8,8,8], index: 4, kind: output, shape index: {0}]
  %s5 = inlined_call_operand.hbm [shape: f32[8,8,8], index: 5, kind: output, shape index: {1}]
  %s6 = inlined_call_operand.hbm [shape: f32[8,8,8], index: 6, kind: output, shape index: {2}]
  %7 = xla_tuple %s4, %s5, %s6
  %s8 = sld [smem:[#allocation0]]
  $region58: #{tpu_custom_call.1} parent=0
    _
  %s10 = ssub.s32 1, %s8
  %s11 = scalar_select 0, %s10, %s8
  $region1: #{tpu_custom_call.1} parent=0
    #allocation2 [shape = 'u8[32768]{0}', space=vmem, size = 0x8000, scoped, tag = 'input window, operand 0, single buffered']
    #allocation3 [shape = 's32[1]{0}', space=sflag, size = 0x4, scoped, tag = 'scoped memory for tpu_custom_call.1']
    #allocation4 [shape = 's32[1]{0}', space=sflag, size = 0x4, scoped, tag = 'scoped memory for tpu_custom_call.1']
    #allocation5 [shape = 'u8[32768]{0}', space=vmem, size = 0x8000, scoped, tag = 'input window, operand 1, single buffered']
    #allocation6 [shape = 's32[1]{0}', space=sflag, size = 0x4, scoped, tag = 'scoped memory for tpu_custom_call.1']
    #allocation7 [shape = 'u8[32768]{0}', space=vmem, size = 0x8000, scoped, tag = 'input window, operand 2, single buffered']
    #allocation8 [shape = 'u8[32768]{0}', space=vmem, size = 0x8000, scoped, tag = 'input window, operand 3, single buffered']
    #allocation9 [shape = 's32[1]{0}', space=sflag, size = 0x4, scoped, tag = 'scoped memory for tpu_custom_call.1']
    #allocation10 [shape = 'u8[32768]{0}', space=vmem, size = 0x8000, scoped, tag = 'output window, operand 0, single buffered']
    #allocation11 [shape = 'u8[32768]{0}', space=vmem, size = 0x8000, scoped, tag = 'output window, operand 1, single buffered']
    #allocation12 [shape = 's32[1]{0}', space=sflag, size = 0x4, scoped, tag = 'scoped memory for tpu_custom_call.1']
    #allocation13 [shape = 'u8[32768]{0}', space=vmem, size = 0x8000, scoped, tag = 'output window, operand 2, single buffered']
    %12 = vsyncpa [#allocation3], 0
    %13 = vsyncpa [#allocation6], 0
    %14 = vsyncpa [#allocation9], 0
    %15 = vsyncpa [#allocation4], 0
    %16 = vsyncpa [#allocation12], 0
    // Predicated region
    $region2: #{tpu_custom_call.1} parent=1 // pred_check
      _
    $region3: #{tpu_custom_call.1} parent=1 // pred_check_branch
      %18 = sbr.rel (0) target = $region5
    $region4: #{tpu_custom_call.1} parent=1 // pred_region
      %s20 = ssub.s32 1024, 1024
      %21 = vsyncadd [#allocation3], %s20
      %s22 = sshll.u32 [#allocation2], 4
      %s23 = int_to_ptr.vmem [resolvable:$true] %s22
      %28 = dma.hbm_to_vmem [thread:$0]  %s0, 1024, %s23, [#allocation3], 128, 128, 8
    $region5: #{tpu_custom_call.1} parent=1 // pred_fallthru
      _
    // Predicated region
    $region6: #{tpu_custom_call.1} parent=1 // pred_check
      _
    $region7: #{tpu_custom_call.1} parent=1 // pred_check_branch
      %30 = sbr.rel (0) target = $region9
    $region8: #{tpu_custom_call.1} parent=1 // pred_region
      %s32 = ssub.s32 1024, 1024
      %33 = vsyncadd [#allocation6], %s32
      %s34 = sshll.u32 [#allocation5], 4
      %s35 = int_to_ptr.vmem [resolvable:$true] %s34
      %40 = dma.hbm_to_vmem [thread:$0]  %s1, 1024, %s35, [#allocation6], 128, 128, 8
    $region9: #{tpu_custom_call.1} parent=1 // pred_fallthru
      _
    // Predicated region
    $region10: #{tpu_custom_call.1} parent=1 // pred_check
      _
    $region11: #{tpu_custom_call.1} parent=1 // pred_check_branch
      %42 = sbr.rel (0) target = $region13
    $region12: #{tpu_custom_call.1} parent=1 // pred_region
      %s44 = ssub.s32 1024, 1024
      %45 = vsyncadd [#allocation6], %s44
      %s46 = sshll.u32 [#allocation7], 4
      %s47 = int_to_ptr.vmem [resolvable:$true] %s46
      %52 = dma.hbm_to_vmem [thread:$0]  %s2, 1024, %s47, [#allocation6], 128, 128, 8
    $region13: #{tpu_custom_call.1} parent=1 // pred_fallthru
      _
    // Predicated region
    $region14: #{tpu_custom_call.1} parent=1 // pred_check
      _
    $region15: #{tpu_custom_call.1} parent=1 // pred_check_branch
      %54 = sbr.rel (0) target = $region17
    $region16: #{tpu_custom_call.1} parent=1 // pred_region
      %s56 = ssub.s32 1024, 1024
      %57 = vsyncadd [#allocation9], %s56
      %s58 = sshll.u32 [#allocation8], 4
      %s59 = int_to_ptr.vmem [resolvable:$true] %s58
      %64 = dma.hbm_to_vmem [thread:$0]  %s3, 1024, %s59, [#allocation9], 128, 128, 8
    $region17: #{tpu_custom_call.1} parent=1 // pred_fallthru
      _
    // Predicated region
    $region18: #{tpu_custom_call.1} parent=1 // pred_check
      _
    $region19: #{tpu_custom_call.1} parent=1 // pred_check_branch
      %66 = sbr.rel (0) target = $region21
    $region20: #{tpu_custom_call.1} parent=1 // pred_region
      %67 = dma.done [#allocation3], 1024
    $region21: #{tpu_custom_call.1} parent=1 // pred_fallthru
      _
    // Predicated region
    $region22: #{tpu_custom_call.1} parent=1 // pred_check
      _
    $region23: #{tpu_custom_call.1} parent=1 // pred_check_branch
      %69 = sbr.rel (0) target = $region25
    $region24: #{tpu_custom_call.1} parent=1 // pred_region
      %70 = dma.done [#allocation6], 1024
    $region25: #{tpu_custom_call.1} parent=1 // pred_fallthru
      _
    // Predicated region
    $region26: #{tpu_custom_call.1} parent=1 // pred_check
      _
    $region27: #{tpu_custom_call.1} parent=1 // pred_check_branch
      %72 = sbr.rel (0) target = $region29
    $region28: #{tpu_custom_call.1} parent=1 // pred_region
      %73 = dma.done [#allocation6], 1024
    $region29: #{tpu_custom_call.1} parent=1 // pred_fallthru
      _
    // Predicated region
    $region30: #{tpu_custom_call.1} parent=1 // pred_check
      _
    $region31: #{tpu_custom_call.1} parent=1 // pred_check_branch
      %75 = sbr.rel (0) target = $region33
    $region32: #{tpu_custom_call.1} parent=1 // pred_region
      %76 = dma.done [#allocation9], 1024
    $region33: #{tpu_custom_call.1} parent=1 // pred_fallthru
      _
    %v77 = vld [vmem:[#allocation2] sm:$0xff]
    %v78 = vld [vmem:[#allocation2 + $0x8] sm:$0xff]
    %v79 = vld [vmem:[#allocation2 + $0x10] sm:$0xff]
    %v80 = vld [vmem:[#allocation2 + $0x18] sm:$0xff]
    %v81 = vld [vmem:[#allocation2 + $0x20] sm:$0xff]
    %v82 = vld [vmem:[#allocation2 + $0x28] sm:$0xff]
    %v83 = vld [vmem:[#allocation2 + $0x30] sm:$0xff]
    %v84 = vld [vmem:[#allocation2 + $0x38] sm:$0xff]
    %v85 = vmul.f32 %v77, 0.35355338
    %v86 = vmul.f32 %v78, 0.35355338
    %v87 = vmul.f32 %v79, 0.35355338
    %v88 = vmul.f32 %v80, 0.35355338
    %v89 = vmul.f32 %v81, 0.35355338
    %v90 = vmul.f32 %v82, 0.35355338
    %v91 = vmul.f32 %v83, 0.35355338
    %v92 = vmul.f32 %v84, 0.35355338
    %v93 = vld [vmem:[#allocation5] sm:$0xff]
    %v94 = vld [vmem:[#allocation5 + $0x8] sm:$0xff]
    %v95 = vld [vmem:[#allocation5 + $0x10] sm:$0xff]
    %v96 = vld [vmem:[#allocation5 + $0x18] sm:$0xff]
    %v97 = vld [vmem:[#allocation5 + $0x20] sm:$0xff]
    %v98 = vld [vmem:[#allocation5 + $0x28] sm:$0xff]
    %v99 = vld [vmem:[#allocation5 + $0x30] sm:$0xff]
    %v100 = vld [vmem:[#allocation5 + $0x38] sm:$0xff]
    %v101 = vld [vmem:[#allocation8] sm:$0xff]
    %v102 = vld [vmem:[#allocation8 + $0x8] sm:$0xff]
    %v103 = vld [vmem:[#allocation8 + $0x10] sm:$0xff]
    %v104 = vld [vmem:[#allocation8 + $0x18] sm:$0xff]
    %v105 = vld [vmem:[#allocation8 + $0x20] sm:$0xff]
    %v106 = vld [vmem:[#allocation8 + $0x28] sm:$0xff]
    %v107 = vld [vmem:[#allocation8 + $0x30] sm:$0xff]
    %v108 = vld [vmem:[#allocation8 + $0x38] sm:$0xff]
    %vm109 = vcmask 64512
    %v111 = vsel %vm109, %v85, 0
    %113 = vmatprep.subr.mxu0 0.0
    %114 = vmatpush1.msra.mxu0 %v93
    %115 = vmatprep.subr.mxu0 0.0
    %116 = vmatpush1.msra.mxu0 0.0
    %117 = vmatprep.subr.mxu0 0.0
    %118 = vmatpush1.msra.mxu0 0.0
    %119 = vmatprep.subr.mxu0 0.0
    %120 = vmatpush1.msra.mxu0 0.0
    %121 = vmatprep.subr.mxu0 0.0
    %122 = vmatpush1.msra.mxu0 0.0
    %123 = vmatprep.subr.mxu0 0.0
    %124 = vmatpush1.msra.mxu0 0.0
    %125 = vmatprep.subr.mxu0 0.0
    %126 = vmatpush1.msra.mxu0 0.0
    %127 = vmatprep.subr.mxu0 0.0
    %128 = vmatpush1.msra.mxu0 0.0
    %129 = vmatprep.subr.mxu0 0.0
    %130 = vmatpush1.msra.mxu0 0.0
    %131 = vmatprep.subr.mxu0 0.0
    %132 = vmatpush1.msra.mxu0 0.0
    %133 = vmatprep.subr.mxu0 0.0
    %134 = vmatpush1.msra.mxu0 0.0
    %135 = vmatprep.subr.mxu0 0.0
    %136 = vmatpush1.msra.mxu0 0.0
    %137 = vmatprep.subr.mxu0 0.0
    %138 = vmatpush1.msra.mxu0 0.0
    %139 = vmatprep.subr.mxu0 0.0
    %140 = vmatpush1.msra.mxu0 0.0
    %141 = vmatprep.subr.mxu0 0.0
    %142 = vmatpush1.msra.mxu0 0.0
    %143 = vmatprep.subr.mxu0 0.0
    %144 = vmatpush1.msra.mxu0 0.0
    %145 = vmatprep.subr.mxu0 0.0
    %146 = vmatpush1.msra.mxu0 0.0
    %147 = vmatprep.subr.mxu0 0.0
    %148 = vmatpush1.msra.mxu0 0.0
    %149 = vmatprep.subr.mxu0 0.0
    %150 = vmatpush1.msra.mxu0 0.0
    %151 = vmatprep.subr.mxu0 0.0
    %152 = vmatpush1.msra.mxu0 0.0
    %153 = vmatprep.subr.mxu0 0.0
    %154 = vmatpush1.msra.mxu0 0.0
    %155 = vmatprep.subr.mxu0 0.0
    %156 = vmatpush1.msra.mxu0 0.0
    %157 = vmatprep.subr.mxu0 0.0
    %158 = vmatpush1.msra.mxu0 0.0
    %159 = vmatprep.subr.mxu0 0.0
    %160 = vmatpush1.msra.mxu0 0.0
    %161 = vmatprep.subr.mxu0 0.0
    %162 = vmatpush1.msra.mxu0 0.0
    %163 = vmatprep.subr.mxu0 0.0
    %164 = vmatpush1.msra.mxu0 0.0
    %165 = vmatprep.subr.mxu0 0.0
    %166 = vmatpush1.msra.mxu0 0.0
    %167 = vmatprep.subr.mxu0 0.0
    %168 = vmatpush1.msra.mxu0 0.0
    %169 = vmatprep.subr.mxu0 0.0
    %170 = vmatpush1.msra.mxu0 0.0
    %171 = vmatprep.subr.mxu0 0.0
    %172 = vmatpush1.msra.mxu0 0.0
    %173 = vmatprep.subr.mxu0 0.0
    %174 = vmatpush1.msra.mxu0 0.0
    %175 = vmatprep.subr.mxu0 0.0
    %176 = vmatpush1.msra.mxu0 0.0
    %177 = vmatprep.mubr.f32.mxu0 0.0
    %178 = vmatmul.mubr.f32.gmra.mrb[0].mxu0 %v111
    %v179 = vpop.f32.mrb[0].mxu0
    %v180 = vadd.f32 %v101, %v179
    %v181 = vpop.f32.mrb[0].mxu0
    %182 = vdwg.mxu0
    %v184 = vsel %vm109, %v86, 0
    %186 = vmatprep.subr.mxu0 0.0
    %187 = vmatpush1.msra.mxu0 %v94
    %188 = vmatprep.subr.mxu0 0.0
    %189 = vmatpush1.msra.mxu0 0.0
    %190 = vmatprep.subr.mxu0 0.0
    %191 = vmatpush1.msra.mxu0 0.0
    %192 = vmatprep.subr.mxu0 0.0
    %193 = vmatpush1.msra.mxu0 0.0
    %194 = vmatprep.subr.mxu0 0.0
    %195 = vmatpush1.msra.mxu0 0.0
    %196 = vmatprep.subr.mxu0 0.0
    %197 = vmatpush1.msra.mxu0 0.0
    %198 = vmatprep.subr.mxu0 0.0
    %199 = vmatpush1.msra.mxu0 0.0
    %200 = vmatprep.subr.mxu0 0.0
    %201 = vmatpush1.msra.mxu0 0.0
    %202 = vmatprep.subr.mxu0 0.0
    %203 = vmatpush1.msra.mxu0 0.0
    %204 = vmatprep.subr.mxu0 0.0
    %205 = vmatpush1.msra.mxu0 0.0
    %206 = vmatprep.subr.mxu0 0.0
    %207 = vmatpush1.msra.mxu0 0.0
    %208 = vmatprep.subr.mxu0 0.0
    %209 = vmatpush1.msra.mxu0 0.0
    %210 = vmatprep.subr.mxu0 0.0
    %211 = vmatpush1.msra.mxu0 0.0
    %212 = vmatprep.subr.mxu0 0.0
    %213 = vmatpush1.msra.mxu0 0.0
    %214 = vmatprep.subr.mxu0 0.0
    %215 = vmatpush1.msra.mxu0 0.0
    %216 = vmatprep.subr.mxu0 0.0
    %217 = vmatpush1.msra.mxu0 0.0
    %218 = vmatprep.subr.mxu0 0.0
    %219 = vmatpush1.msra.mxu0 0.0
    %220 = vmatprep.subr.mxu0 0.0
    %221 = vmatpush1.msra.mxu0 0.0
    %222 = vmatprep.subr.mxu0 0.0
    %223 = vmatpush1.msra.mxu0 0.0
    %224 = vmatprep.subr.mxu0 0.0
    %225 = vmatpush1.msra.mxu0 0.0
    %226 = vmatprep.subr.mxu0 0.0
    %227 = vmatpush1.msra.mxu0 0.0
    %228 = vmatprep.subr.mxu0 0.0
    %229 = vmatpush1.msra.mxu0 0.0
    %230 = vmatprep.subr.mxu0 0.0
    %231 = vmatpush1.msra.mxu0 0.0
    %232 = vmatprep.subr.mxu0 0.0
    %233 = vmatpush1.msra.mxu0 0.0
    %234 = vmatprep.subr.mxu0 0.0
    %235 = vmatpush1.msra.mxu0 0.0
    %236 = vmatprep.subr.mxu0 0.0
    %237 = vmatpush1.msra.mxu0 0.0
    %238 = vmatprep.subr.mxu0 0.0
    %239 = vmatpush1.msra.mxu0 0.0
    %240 = vmatprep.subr.mxu0 0.0
    %241 = vmatpush1.msra.mxu0 0.0
    %242 = vmatprep.subr.mxu0 0.0
    %243 = vmatpush1.msra.mxu0 0.0
    %244 = vmatprep.subr.mxu0 0.0
    %245 = vmatpush1.msra.mxu0 0.0
    %246 = vmatprep.subr.mxu0 0.0
    %247 = vmatpush1.msra.mxu0 0.0
    %248 = vmatprep.subr.mxu0 0.0
    %249 = vmatpush1.msra.mxu0 0.0
    %250 = vmatprep.mubr.f32.mxu0 0.0
    %251 = vmatmul.mubr.f32.gmra.mrb[0].mxu0 %v184
    %v252 = vpop.f32.mrb[0].mxu0
    %v253 = vadd.f32 %v102, %v252
    %v254 = vpop.f32.mrb[0].mxu0
    %255 = vdwg.mxu0
    %v257 = vsel %vm109, %v87, 0
    %259 = vmatprep.subr.mxu0 0.0
    %260 = vmatpush1.msra.mxu0 %v95
    %261 = vmatprep.subr.mxu0 0.0
    %262 = vmatpush1.msra.mxu0 0.0
    %263 = vmatprep.subr.mxu0 0.0
    %264 = vmatpush1.msra.mxu0 0.0
    %265 = vmatprep.subr.mxu0 0.0
    %266 = vmatpush1.msra.mxu0 0.0
    %267 = vmatprep.subr.mxu0 0.0
    %268 = vmatpush1.msra.mxu0 0.0
    %269 = vmatprep.subr.mxu0 0.0
    %270 = vmatpush1.msra.mxu0 0.0
    %271 = vmatprep.subr.mxu0 0.0
    %272 = vmatpush1.msra.mxu0 0.0
    %273 = vmatprep.subr.mxu0 0.0
    %274 = vmatpush1.msra.mxu0 0.0
    %275 = vmatprep.subr.mxu0 0.0
    %276 = vmatpush1.msra.mxu0 0.0
    %277 = vmatprep.subr.mxu0 0.0
    %278 = vmatpush1.msra.mxu0 0.0
    %279 = vmatprep.subr.mxu0 0.0
    %280 = vmatpush1.msra.mxu0 0.0
    %281 = vmatprep.subr.mxu0 0.0
    %282 = vmatpush1.msra.mxu0 0.0
    %283 = vmatprep.subr.mxu0 0.0
    %284 = vmatpush1.msra.mxu0 0.0
    %285 = vmatprep.subr.mxu0 0.0
    %286 = vmatpush1.msra.mxu0 0.0
    %287 = vmatprep.subr.mxu0 0.0
    %288 = vmatpush1.msra.mxu0 0.0
    %289 = vmatprep.subr.mxu0 0.0
    %290 = vmatpush1.msra.mxu0 0.0
    %291 = vmatprep.subr.mxu0 0.0
    %292 = vmatpush1.msra.mxu0 0.0
    %293 = vmatprep.subr.mxu0 0.0
    %294 = vmatpush1.msra.mxu0 0.0
    %295 = vmatprep.subr.mxu0 0.0
    %296 = vmatpush1.msra.mxu0 0.0
    %297 = vmatprep.subr.mxu0 0.0
    %298 = vmatpush1.msra.mxu0 0.0
    %299 = vmatprep.subr.mxu0 0.0
    %300 = vmatpush1.msra.mxu0 0.0
    %301 = vmatprep.subr.mxu0 0.0
    %302 = vmatpush1.msra.mxu0 0.0
    %303 = vmatprep.subr.mxu0 0.0
    %304 = vmatpush1.msra.mxu0 0.0
    %305 = vmatprep.subr.mxu0 0.0
    %306 = vmatpush1.msra.mxu0 0.0
    %307 = vmatprep.subr.mxu0 0.0
    %308 = vmatpush1.msra.mxu0 0.0
    %309 = vmatprep.subr.mxu0 0.0
    %310 = vmatpush1.msra.mxu0 0.0
    %311 = vmatprep.subr.mxu0 0.0
    %312 = vmatpush1.msra.mxu0 0.0
    %313 = vmatprep.subr.mxu0 0.0
    %314 = vmatpush1.msra.mxu0 0.0
    %315 = vmatprep.subr.mxu0 0.0
    %316 = vmatpush1.msra.mxu0 0.0
    %317 = vmatprep.subr.mxu0 0.0
    %318 = vmatpush1.msra.mxu0 0.0
    %319 = vmatprep.subr.mxu0 0.0
    %320 = vmatpush1.msra.mxu0 0.0
    %321 = vmatprep.subr.mxu0 0.0
    %322 = vmatpush1.msra.mxu0 0.0
    %323 = vmatprep.mubr.f32.mxu0 0.0
    %324 = vmatmul.mubr.f32.gmra.mrb[0].mxu0 %v257
    %v325 = vpop.f32.mrb[0].mxu0
    %v326 = vadd.f32 %v103, %v325
    %v327 = vpop.f32.mrb[0].mxu0
    %328 = vdwg.mxu0
    %v330 = vsel %vm109, %v88, 0
    %332 = vmatprep.subr.mxu0 0.0
    %333 = vmatpush1.msra.mxu0 %v96
    %334 = vmatprep.subr.mxu0 0.0
    %335 = vmatpush1.msra.mxu0 0.0
    %336 = vmatprep.subr.mxu0 0.0
    %337 = vmatpush1.msra.mxu0 0.0
    %338 = vmatprep.subr.mxu0 0.0
    %339 = vmatpush1.msra.mxu0 0.0
    %340 = vmatprep.subr.mxu0 0.0
    %341 = vmatpush1.msra.mxu0 0.0
    %342 = vmatprep.subr.mxu0 0.0
    %343 = vmatpush1.msra.mxu0 0.0
    %344 = vmatprep.subr.mxu0 0.0
    %345 = vmatpush1.msra.mxu0 0.0
    %346 = vmatprep.subr.mxu0 0.0
    %347 = vmatpush1.msra.mxu0 0.0
    %348 = vmatprep.subr.mxu0 0.0
    %349 = vmatpush1.msra.mxu0 0.0
    %350 = vmatprep.subr.mxu0 0.0
    %351 = vmatpush1.msra.mxu0 0.0
    %352 = vmatprep.subr.mxu0 0.0
    %353 = vmatpush1.msra.mxu0 0.0
    %354 = vmatprep.subr.mxu0 0.0
    %355 = vmatpush1.msra.mxu0 0.0
    %356 = vmatprep.subr.mxu0 0.0
    %357 = vmatpush1.msra.mxu0 0.0
    %358 = vmatprep.subr.mxu0 0.0
    %359 = vmatpush1.msra.mxu0 0.0
    %360 = vmatprep.subr.mxu0 0.0
    %361 = vmatpush1.msra.mxu0 0.0
    %362 = vmatprep.subr.mxu0 0.0
    %363 = vmatpush1.msra.mxu0 0.0
    %364 = vmatprep.subr.mxu0 0.0
    %365 = vmatpush1.msra.mxu0 0.0
    %366 = vmatprep.subr.mxu0 0.0
    %367 = vmatpush1.msra.mxu0 0.0
    %368 = vmatprep.subr.mxu0 0.0
    %369 = vmatpush1.msra.mxu0 0.0
    %370 = vmatprep.subr.mxu0 0.0
    %371 = vmatpush1.msra.mxu0 0.0
    %372 = vmatprep.subr.mxu0 0.0
    %373 = vmatpush1.msra.mxu0 0.0
    %374 = vmatprep.subr.mxu0 0.0
    %375 = vmatpush1.msra.mxu0 0.0
    %376 = vmatprep.subr.mxu0 0.0
    %377 = vmatpush1.msra.mxu0 0.0
    %378 = vmatprep.subr.mxu0 0.0
    %379 = vmatpush1.msra.mxu0 0.0
    %380 = vmatprep.subr.mxu0 0.0
    %381 = vmatpush1.msra.mxu0 0.0
    %382 = vmatprep.subr.mxu0 0.0
    %383 = vmatpush1.msra.mxu0 0.0
    %384 = vmatprep.subr.mxu0 0.0
    %385 = vmatpush1.msra.mxu0 0.0
    %386 = vmatprep.subr.mxu0 0.0
    %387 = vmatpush1.msra.mxu0 0.0
    %388 = vmatprep.subr.mxu0 0.0
    %389 = vmatpush1.msra.mxu0 0.0
    %390 = vmatprep.subr.mxu0 0.0
    %391 = vmatpush1.msra.mxu0 0.0
    %392 = vmatprep.subr.mxu0 0.0
    %393 = vmatpush1.msra.mxu0 0.0
    %394 = vmatprep.subr.mxu0 0.0
    %395 = vmatpush1.msra.mxu0 0.0
    %396 = vmatprep.mubr.f32.mxu0 0.0
    %397 = vmatmul.mubr.f32.gmra.mrb[0].mxu0 %v330
    %v398 = vpop.f32.mrb[0].mxu0
    %v399 = vadd.f32 %v104, %v398
    %v400 = vpop.f32.mrb[0].mxu0
    %401 = vdwg.mxu0
    %v403 = vsel %vm109, %v89, 0
    %405 = vmatprep.subr.mxu0 0.0
    %406 = vmatpush1.msra.mxu0 %v97
    %407 = vmatprep.subr.mxu0 0.0
    %408 = vmatpush1.msra.mxu0 0.0
    %409 = vmatprep.subr.mxu0 0.0
    %410 = vmatpush1.msra.mxu0 0.0
    %411 = vmatprep.subr.mxu0 0.0
    %412 = vmatpush1.msra.mxu0 0.0
    %413 = vmatprep.subr.mxu0 0.0
    %414 = vmatpush1.msra.mxu0 0.0
    %415 = vmatprep.subr.mxu0 0.0
    %416 = vmatpush1.msra.mxu0 0.0
    %417 = vmatprep.subr.mxu0 0.0
    %418 = vmatpush1.msra.mxu0 0.0
    %419 = vmatprep.subr.mxu0 0.0
    %420 = vmatpush1.msra.mxu0 0.0
    %421 = vmatprep.subr.mxu0 0.0
    %422 = vmatpush1.msra.mxu0 0.0
    %423 = vmatprep.subr.mxu0 0.0
    %424 = vmatpush1.msra.mxu0 0.0
    %425 = vmatprep.subr.mxu0 0.0
    %426 = vmatpush1.msra.mxu0 0.0
    %427 = vmatprep.subr.mxu0 0.0
    %428 = vmatpush1.msra.mxu0 0.0
    %429 = vmatprep.subr.mxu0 0.0
    %430 = vmatpush1.msra.mxu0 0.0
    %431 = vmatprep.subr.mxu0 0.0
    %432 = vmatpush1.msra.mxu0 0.0
    %433 = vmatprep.subr.mxu0 0.0
    %434 = vmatpush1.msra.mxu0 0.0
    %435 = vmatprep.subr.mxu0 0.0
    %436 = vmatpush1.msra.mxu0 0.0
    %437 = vmatprep.subr.mxu0 0.0
    %438 = vmatpush1.msra.mxu0 0.0
    %439 = vmatprep.subr.mxu0 0.0
    %440 = vmatpush1.msra.mxu0 0.0
    %441 = vmatprep.subr.mxu0 0.0
    %442 = vmatpush1.msra.mxu0 0.0
    %443 = vmatprep.subr.mxu0 0.0
    %444 = vmatpush1.msra.mxu0 0.0
    %445 = vmatprep.subr.mxu0 0.0
    %446 = vmatpush1.msra.mxu0 0.0
    %447 = vmatprep.subr.mxu0 0.0
    %448 = vmatpush1.msra.mxu0 0.0
    %449 = vmatprep.subr.mxu0 0.0
    %450 = vmatpush1.msra.mxu0 0.0
    %451 = vmatprep.subr.mxu0 0.0
    %452 = vmatpush1.msra.mxu0 0.0
    %453 = vmatprep.subr.mxu0 0.0
    %454 = vmatpush1.msra.mxu0 0.0
    %455 = vmatprep.subr.mxu0 0.0
    %456 = vmatpush1.msra.mxu0 0.0
    %457 = vmatprep.subr.mxu0 0.0
    %458 = vmatpush1.msra.mxu0 0.0
    %459 = vmatprep.subr.mxu0 0.0
    %460 = vmatpush1.msra.mxu0 0.0
    %461 = vmatprep.subr.mxu0 0.0
    %462 = vmatpush1.msra.mxu0 0.0
    %463 = vmatprep.subr.mxu0 0.0
    %464 = vmatpush1.msra.mxu0 0.0
    %465 = vmatprep.subr.mxu0 0.0
    %466 = vmatpush1.msra.mxu0 0.0
    %467 = vmatprep.subr.mxu0 0.0
    %468 = vmatpush1.msra.mxu0 0.0
    %469 = vmatprep.mubr.f32.mxu0 0.0
    %470 = vmatmul.mubr.f32.gmra.mrb[0].mxu0 %v403
    %v471 = vpop.f32.mrb[0].mxu0
    %v472 = vadd.f32 %v105, %v471
    %v473 = vpop.f32.mrb[0].mxu0
    %474 = vdwg.mxu0
    %v476 = vsel %vm109, %v90, 0
    %478 = vmatprep.subr.mxu0 0.0
    %479 = vmatpush1.msra.mxu0 %v98
    %480 = vmatprep.subr.mxu0 0.0
    %481 = vmatpush1.msra.mxu0 0.0
    %482 = vmatprep.subr.mxu0 0.0
    %483 = vmatpush1.msra.mxu0 0.0
    %484 = vmatprep.subr.mxu0 0.0
    %485 = vmatpush1.msra.mxu0 0.0
    %486 = vmatprep.subr.mxu0 0.0
    %487 = vmatpush1.msra.mxu0 0.0
    %488 = vmatprep.subr.mxu0 0.0
    %489 = vmatpush1.msra.mxu0 0.0
    %490 = vmatprep.subr.mxu0 0.0
    %491 = vmatpush1.msra.mxu0 0.0
    %492 = vmatprep.subr.mxu0 0.0
    %493 = vmatpush1.msra.mxu0 0.0
    %494 = vmatprep.subr.mxu0 0.0
    %495 = vmatpush1.msra.mxu0 0.0
    %496 = vmatprep.subr.mxu0 0.0
    %497 = vmatpush1.msra.mxu0 0.0
    %498 = vmatprep.subr.mxu0 0.0
    %499 = vmatpush1.msra.mxu0 0.0
    %500 = vmatprep.subr.mxu0 0.0
    %501 = vmatpush1.msra.mxu0 0.0
    %502 = vmatprep.subr.mxu0 0.0
    %503 = vmatpush1.msra.mxu0 0.0
    %504 = vmatprep.subr.mxu0 0.0
    %505 = vmatpush1.msra.mxu0 0.0
    %506 = vmatprep.subr.mxu0 0.0
    %507 = vmatpush1.msra.mxu0 0.0
    %508 = vmatprep.subr.mxu0 0.0
    %509 = vmatpush1.msra.mxu0 0.0
    %510 = vmatprep.subr.mxu0 0.0
    %511 = vmatpush1.msra.mxu0 0.0
    %512 = vmatprep.subr.mxu0 0.0
    %513 = vmatpush1.msra.mxu0 0.0
    %514 = vmatprep.subr.mxu0 0.0
    %515 = vmatpush1.msra.mxu0 0.0
    %516 = vmatprep.subr.mxu0 0.0
    %517 = vmatpush1.msra.mxu0 0.0
    %518 = vmatprep.subr.mxu0 0.0
    %519 = vmatpush1.msra.mxu0 0.0
    %520 = vmatprep.subr.mxu0 0.0
    %521 = vmatpush1.msra.mxu0 0.0
    %522 = vmatprep.subr.mxu0 0.0
    %523 = vmatpush1.msra.mxu0 0.0
    %524 = vmatprep.subr.mxu0 0.0
    %525 = vmatpush1.msra.mxu0 0.0
    %526 = vmatprep.subr.mxu0 0.0
    %527 = vmatpush1.msra.mxu0 0.0
    %528 = vmatprep.subr.mxu0 0.0
    %529 = vmatpush1.msra.mxu0 0.0
    %530 = vmatprep.subr.mxu0 0.0
    %531 = vmatpush1.msra.mxu0 0.0
    %532 = vmatprep.subr.mxu0 0.0
    %533 = vmatpush1.msra.mxu0 0.0
    %534 = vmatprep.subr.mxu0 0.0
    %535 = vmatpush1.msra.mxu0 0.0
    %536 = vmatprep.subr.mxu0 0.0
    %537 = vmatpush1.msra.mxu0 0.0
    %538 = vmatprep.subr.mxu0 0.0
    %539 = vmatpush1.msra.mxu0 0.0
    %540 = vmatprep.subr.mxu0 0.0
    %541 = vmatpush1.msra.mxu0 0.0
    %542 = vmatprep.mubr.f32.mxu0 0.0
    %543 = vmatmul.mubr.f32.gmra.mrb[0].mxu0 %v476
    %v544 = vpop.f32.mrb[0].mxu0
    %v545 = vadd.f32 %v106, %v544
    %v546 = vpop.f32.mrb[0].mxu0
    %547 = vdwg.mxu0
    %v549 = vsel %vm109, %v91, 0
    %551 = vmatprep.subr.mxu0 0.0
    %552 = vmatpush1.msra.mxu0 %v99
    %553 = vmatprep.subr.mxu0 0.0
    %554 = vmatpush1.msra.mxu0 0.0
    %555 = vmatprep.subr.mxu0 0.0
    %556 = vmatpush1.msra.mxu0 0.0
    %557 = vmatprep.subr.mxu0 0.0
    %558 = vmatpush1.msra.mxu0 0.0
    %559 = vmatprep.subr.mxu0 0.0
    %560 = vmatpush1.msra.mxu0 0.0
    %561 = vmatprep.subr.mxu0 0.0
    %562 = vmatpush1.msra.mxu0 0.0
    %563 = vmatprep.subr.mxu0 0.0
    %564 = vmatpush1.msra.mxu0 0.0
    %565 = vmatprep.subr.mxu0 0.0
    %566 = vmatpush1.msra.mxu0 0.0
    %567 = vmatprep.subr.mxu0 0.0
    %568 = vmatpush1.msra.mxu0 0.0
    %569 = vmatprep.subr.mxu0 0.0
    %570 = vmatpush1.msra.mxu0 0.0
    %571 = vmatprep.subr.mxu0 0.0
    %572 = vmatpush1.msra.mxu0 0.0
    %573 = vmatprep.subr.mxu0 0.0
    %574 = vmatpush1.msra.mxu0 0.0
    %575 = vmatprep.subr.mxu0 0.0
    %576 = vmatpush1.msra.mxu0 0.0
    %577 = vmatprep.subr.mxu0 0.0
    %578 = vmatpush1.msra.mxu0 0.0
    %579 = vmatprep.subr.mxu0 0.0
    %580 = vmatpush1.msra.mxu0 0.0
    %581 = vmatprep.subr.mxu0 0.0
    %582 = vmatpush1.msra.mxu0 0.0
    %583 = vmatprep.subr.mxu0 0.0
    %584 = vmatpush1.msra.mxu0 0.0
    %585 = vmatprep.subr.mxu0 0.0
    %586 = vmatpush1.msra.mxu0 0.0
    %587 = vmatprep.subr.mxu0 0.0
    %588 = vmatpush1.msra.mxu0 0.0
    %589 = vmatprep.subr.mxu0 0.0
    %590 = vmatpush1.msra.mxu0 0.0
    %591 = vmatprep.subr.mxu0 0.0
    %592 = vmatpush1.msra.mxu0 0.0
    %593 = vmatprep.subr.mxu0 0.0
    %594 = vmatpush1.msra.mxu0 0.0
    %595 = vmatprep.subr.mxu0 0.0
    %596 = vmatpush1.msra.mxu0 0.0
    %597 = vmatprep.subr.mxu0 0.0
    %598 = vmatpush1.msra.mxu0 0.0
    %599 = vmatprep.subr.mxu0 0.0
    %600 = vmatpush1.msra.mxu0 0.0
    %601 = vmatprep.subr.mxu0 0.0
    %602 = vmatpush1.msra.mxu0 0.0
    %603 = vmatprep.subr.mxu0 0.0
    %604 = vmatpush1.msra.mxu0 0.0
    %605 = vmatprep.subr.mxu0 0.0
    %606 = vmatpush1.msra.mxu0 0.0
    %607 = vmatprep.subr.mxu0 0.0
    %608 = vmatpush1.msra.mxu0 0.0
    %609 = vmatprep.subr.mxu0 0.0
    %610 = vmatpush1.msra.mxu0 0.0
    %611 = vmatprep.subr.mxu0 0.0
    %612 = vmatpush1.msra.mxu0 0.0
    %613 = vmatprep.subr.mxu0 0.0
    %614 = vmatpush1.msra.mxu0 0.0
    %615 = vmatprep.mubr.f32.mxu0 0.0
    %616 = vmatmul.mubr.f32.gmra.mrb[0].mxu0 %v549
    %v617 = vpop.f32.mrb[0].mxu0
    %v618 = vadd.f32 %v107, %v617
    %v619 = vpop.f32.mrb[0].mxu0
    %620 = vdwg.mxu0
    %v622 = vsel %vm109, %v92, 0
    %624 = vmatprep.subr.mxu0 0.0
    %625 = vmatpush1.msra.mxu0 %v100
    %626 = vmatprep.subr.mxu0 0.0
    %627 = vmatpush1.msra.mxu0 0.0
    %628 = vmatprep.subr.mxu0 0.0
    %629 = vmatpush1.msra.mxu0 0.0
    %630 = vmatprep.subr.mxu0 0.0
    %631 = vmatpush1.msra.mxu0 0.0
    %632 = vmatprep.subr.mxu0 0.0
    %633 = vmatpush1.msra.mxu0 0.0
    %634 = vmatprep.subr.mxu0 0.0
    %635 = vmatpush1.msra.mxu0 0.0
    %636 = vmatprep.subr.mxu0 0.0
    %637 = vmatpush1.msra.mxu0 0.0
    %638 = vmatprep.subr.mxu0 0.0
    %639 = vmatpush1.msra.mxu0 0.0
    %640 = vmatprep.subr.mxu0 0.0
    %641 = vmatpush1.msra.mxu0 0.0
    %642 = vmatprep.subr.mxu0 0.0
    %643 = vmatpush1.msra.mxu0 0.0
    %644 = vmatprep.subr.mxu0 0.0
    %645 = vmatpush1.msra.mxu0 0.0
    %646 = vmatprep.subr.mxu0 0.0
    %647 = vmatpush1.msra.mxu0 0.0
    %648 = vmatprep.subr.mxu0 0.0
    %649 = vmatpush1.msra.mxu0 0.0
    %650 = vmatprep.subr.mxu0 0.0
    %651 = vmatpush1.msra.mxu0 0.0
    %652 = vmatprep.subr.mxu0 0.0
    %653 = vmatpush1.msra.mxu0 0.0
    %654 = vmatprep.subr.mxu0 0.0
    %655 = vmatpush1.msra.mxu0 0.0
    %656 = vmatprep.subr.mxu0 0.0
    %657 = vmatpush1.msra.mxu0 0.0
    %658 = vmatprep.subr.mxu0 0.0
    %659 = vmatpush1.msra.mxu0 0.0
    %660 = vmatprep.subr.mxu0 0.0
    %661 = vmatpush1.msra.mxu0 0.0
    %662 = vmatprep.subr.mxu0 0.0
    %663 = vmatpush1.msra.mxu0 0.0
    %664 = vmatprep.subr.mxu0 0.0
    %665 = vmatpush1.msra.mxu0 0.0
    %666 = vmatprep.subr.mxu0 0.0
    %667 = vmatpush1.msra.mxu0 0.0
    %668 = vmatprep.subr.mxu0 0.0
    %669 = vmatpush1.msra.mxu0 0.0
    %670 = vmatprep.subr.mxu0 0.0
    %671 = vmatpush1.msra.mxu0 0.0
    %672 = vmatprep.subr.mxu0 0.0
    %673 = vmatpush1.msra.mxu0 0.0
    %674 = vmatprep.subr.mxu0 0.0
    %675 = vmatpush1.msra.mxu0 0.0
    %676 = vmatprep.subr.mxu0 0.0
    %677 = vmatpush1.msra.mxu0 0.0
    %678 = vmatprep.subr.mxu0 0.0
    %679 = vmatpush1.msra.mxu0 0.0
    %680 = vmatprep.subr.mxu0 0.0
    %681 = vmatpush1.msra.mxu0 0.0
    %682 = vmatprep.subr.mxu0 0.0
    %683 = vmatpush1.msra.mxu0 0.0
    %684 = vmatprep.subr.mxu0 0.0
    %685 = vmatpush1.msra.mxu0 0.0
    %686 = vmatprep.subr.mxu0 0.0
    %687 = vmatpush1.msra.mxu0 0.0
    %688 = vmatprep.mubr.f32.mxu0 0.0
    %689 = vmatmul.mubr.f32.gmra.mrb[0].mxu0 %v622
    %v690 = vpop.f32.mrb[0].mxu0
    %v691 = vadd.f32 %v108, %v690
    %v692 = vpop.f32.mrb[0].mxu0
    %693 = vdwg.mxu0
    %694 = vst.msk [vmem:[#allocation13] sm:$0xff] %vm109, %v180
    %695 = vst.msk [vmem:[#allocation13 + $0x8] sm:$0xff] %vm109, %v253
    %696 = vst.msk [vmem:[#allocation13 + $0x10] sm:$0xff] %vm109, %v326
    %697 = vst.msk [vmem:[#allocation13 + $0x18] sm:$0xff] %vm109, %v399
    %698 = vst.msk [vmem:[#allocation13 + $0x20] sm:$0xff] %vm109, %v472
    %699 = vst.msk [vmem:[#allocation13 + $0x28] sm:$0xff] %vm109, %v545
    %700 = vst.msk [vmem:[#allocation13 + $0x30] sm:$0xff] %vm109, %v618
    %701 = vst.msk [vmem:[#allocation13 + $0x38] sm:$0xff] %vm109, %v691
    %v702 = vsel %vm109, %v180, -inf
    %703 = vmax.xlane.f32.xlu0 %v702
    %v704 = vpop.xlane.xlu0 %703
    %v705 = vsel %vm109, %v253, -inf
    %706 = vmax.xlane.f32.xlu0 %v705
    %v707 = vpop.xlane.xlu0 %706
    %v708 = vsel %vm109, %v326, -inf
    %709 = vmax.xlane.f32.xlu0 %v708
    %v710 = vpop.xlane.xlu0 %709
    %v711 = vsel %vm109, %v399, -inf
    %712 = vmax.xlane.f32.xlu0 %v711
    %v713 = vpop.xlane.xlu0 %712
    %v714 = vsel %vm109, %v472, -inf
    %715 = vmax.xlane.f32.xlu0 %v714
    %v716 = vpop.xlane.xlu0 %715
    %v717 = vsel %vm109, %v545, -inf
    %718 = vmax.xlane.f32.xlu0 %v717
    %v719 = vpop.xlane.xlu0 %718
    %v720 = vsel %vm109, %v618, -inf
    %721 = vmax.xlane.f32.xlu0 %v720
    %v722 = vpop.xlane.xlu0 %721
    %v723 = vsel %vm109, %v691, -inf
    %724 = vmax.xlane.f32.xlu0 %v723
    %v725 = vpop.xlane.xlu0 %724
    %v726 = vsub.f32 %v180, %v704
    %v727 = vsub.f32 %v253, %v707
    %v728 = vsub.f32 %v326, %v710
    %v729 = vsub.f32 %v399, %v713
    %v730 = vsub.f32 %v472, %v716
    %v731 = vsub.f32 %v545, %v719
    %v732 = vsub.f32 %v618, %v722
    %v733 = vsub.f32 %v691, %v725
    %v734 = vmul.f32 %v726, 1.442695
    %v735 = vpow.pop %v734
    %v736 = vmul.f32 %v727, 1.442695
    %v737 = vpow.pop %v736
    %v738 = vmul.f32 %v728, 1.442695
    %v739 = vpow.pop %v738
    %v740 = vmul.f32 %v729, 1.442695
    %v741 = vpow.pop %v740
    %v742 = vmul.f32 %v730, 1.442695
    %v743 = vpow.pop %v742
    %v744 = vmul.f32 %v731, 1.442695
    %v745 = vpow.pop %v744
    %v746 = vmul.f32 %v732, 1.442695
    %v747 = vpow.pop %v746
    %v748 = vmul.f32 %v733, 1.442695
    %v749 = vpow.pop %v748
    %v750 = vsel %vm109, %v735, 0.0
    %751 = vadd.xlane.f32.xlu0 %v750
    %v752 = vpop.xlane.xlu0 %751
    %v753 = vsel %vm109, %v737, 0.0
    %754 = vadd.xlane.f32.xlu0 %v753
    %v755 = vpop.xlane.xlu0 %754
    %v756 = vsel %vm109, %v739, 0.0
    %757 = vadd.xlane.f32.xlu0 %v756
    %v758 = vpop.xlane.xlu0 %757
    %v759 = vsel %vm109, %v741, 0.0
    %760 = vadd.xlane.f32.xlu0 %v759
    %v761 = vpop.xlane.xlu0 %760
    %v762 = vsel %vm109, %v743, 0.0
    %763 = vadd.xlane.f32.xlu0 %v762
    %v764 = vpop.xlane.xlu0 %763
    %v765 = vsel %vm109, %v745, 0.0
    %766 = vadd.xlane.f32.xlu0 %v765
    %v767 = vpop.xlane.xlu0 %766
    %v768 = vsel %vm109, %v747, 0.0
    %769 = vadd.xlane.f32.xlu0 %v768
    %v770 = vpop.xlane.xlu0 %769
    %v771 = vsel %vm109, %v749, 0.0
    %772 = vadd.xlane.f32.xlu0 %v771
    %v773 = vpop.xlane.xlu0 %772
    %v774 = vrcp.pop %v752
    %v775 = vmul.f32 %v735, %v774
    %v776 = vrcp.pop %v755
    %v777 = vmul.f32 %v737, %v776
    %v778 = vrcp.pop %v758
    %v779 = vmul.f32 %v739, %v778
    %v780 = vrcp.pop %v761
    %v781 = vmul.f32 %v741, %v780
    %v782 = vrcp.pop %v764
    %v783 = vmul.f32 %v743, %v782
    %v784 = vrcp.pop %v767
    %v785 = vmul.f32 %v745, %v784
    %v786 = vrcp.pop %v770
    %v787 = vmul.f32 %v747, %v786
    %v788 = vrcp.pop %v773
    %v789 = vmul.f32 %v749, %v788
    %790 = vst.msk [vmem:[#allocation11] sm:$0xff] %vm109, %v775
    %791 = vst.msk [vmem:[#allocation11 + $0x8] sm:$0xff] %vm109, %v777
    %792 = vst.msk [vmem:[#allocation11 + $0x10] sm:$0xff] %vm109, %v779
    %793 = vst.msk [vmem:[#allocation11 + $0x18] sm:$0xff] %vm109, %v781
    %794 = vst.msk [vmem:[#allocation11 + $0x20] sm:$0xff] %vm109, %v783
    %795 = vst.msk [vmem:[#allocation11 + $0x28] sm:$0xff] %vm109, %v785
    %796 = vst.msk [vmem:[#allocation11 + $0x30] sm:$0xff] %vm109, %v787
    %797 = vst.msk [vmem:[#allocation11 + $0x38] sm:$0xff] %vm109, %v789
    %v798 = vld [vmem:[#allocation7] sm:$0xff]
    %v799 = vld [vmem:[#allocation7 + $0x8] sm:$0xff]
    %v800 = vld [vmem:[#allocation7 + $0x10] sm:$0xff]
    %v801 = vld [vmem:[#allocation7 + $0x18] sm:$0xff]
    %v802 = vld [vmem:[#allocation7 + $0x20] sm:$0xff]
    %v803 = vld [vmem:[#allocation7 + $0x28] sm:$0xff]
    %v804 = vld [vmem:[#allocation7 + $0x30] sm:$0xff]
    %v805 = vld [vmem:[#allocation7 + $0x38] sm:$0xff]
    %v807 = vsel %vm109, %v775, 0
    %809 = vmatprep.subr.mxu0 0.0
    %810 = vmatpush1.msra.mxu0 %v798
    %811 = vmatprep.subr.mxu0 0.0
    %812 = vmatpush1.msra.mxu0 0.0
    %813 = vmatprep.subr.mxu0 0.0
    %814 = vmatpush1.msra.mxu0 0.0
    %815 = vmatprep.subr.mxu0 0.0
    %816 = vmatpush1.msra.mxu0 0.0
    %817 = vmatprep.subr.mxu0 0.0
    %818 = vmatpush1.msra.mxu0 0.0
    %819 = vmatprep.subr.mxu0 0.0
    %820 = vmatpush1.msra.mxu0 0.0
    %821 = vmatprep.subr.mxu0 0.0
    %822 = vmatpush1.msra.mxu0 0.0
    %823 = vmatprep.subr.mxu0 0.0
    %824 = vmatpush1.msra.mxu0 0.0
    %825 = vmatprep.subr.mxu0 0.0
    %826 = vmatpush1.msra.mxu0 0.0
    %827 = vmatprep.subr.mxu0 0.0
    %828 = vmatpush1.msra.mxu0 0.0
    %829 = vmatprep.subr.mxu0 0.0
    %830 = vmatpush1.msra.mxu0 0.0
    %831 = vmatprep.subr.mxu0 0.0
    %832 = vmatpush1.msra.mxu0 0.0
    %833 = vmatprep.subr.mxu0 0.0
    %834 = vmatpush1.msra.mxu0 0.0
    %835 = vmatprep.subr.mxu0 0.0
    %836 = vmatpush1.msra.mxu0 0.0
    %837 = vmatprep.subr.mxu0 0.0
    %838 = vmatpush1.msra.mxu0 0.0
    %839 = vmatprep.subr.mxu0 0.0
    %840 = vmatpush1.msra.mxu0 0.0
    %841 = vmatprep.subr.mxu0 0.0
    %842 = vmatpush1.msra.mxu0 0.0
    %843 = vmatprep.subr.mxu0 0.0
    %844 = vmatpush1.msra.mxu0 0.0
    %845 = vmatprep.subr.mxu0 0.0
    %846 = vmatpush1.msra.mxu0 0.0
    %847 = vmatprep.subr.mxu0 0.0
    %848 = vmatpush1.msra.mxu0 0.0
    %849 = vmatprep.subr.mxu0 0.0
    %850 = vmatpush1.msra.mxu0 0.0
    %851 = vmatprep.subr.mxu0 0.0
    %852 = vmatpush1.msra.mxu0 0.0
    %853 = vmatprep.subr.mxu0 0.0
    %854 = vmatpush1.msra.mxu0 0.0
    %855 = vmatprep.subr.mxu0 0.0
    %856 = vmatpush1.msra.mxu0 0.0
    %857 = vmatprep.subr.mxu0 0.0
    %858 = vmatpush1.msra.mxu0 0.0
    %859 = vmatprep.subr.mxu0 0.0
    %860 = vmatpush1.msra.mxu0 0.0
    %861 = vmatprep.subr.mxu0 0.0
    %862 = vmatpush1.msra.mxu0 0.0
    %863 = vmatprep.subr.mxu0 0.0
    %864 = vmatpush1.msra.mxu0 0.0
    %865 = vmatprep.subr.mxu0 0.0
    %866 = vmatpush1.msra.mxu0 0.0
    %867 = vmatprep.subr.mxu0 0.0
    %868 = vmatpush1.msra.mxu0 0.0
    %869 = vmatprep.subr.mxu0 0.0
    %870 = vmatpush1.msra.mxu0 0.0
    %871 = vmatprep.subr.mxu0 0.0
    %872 = vmatpush1.msra.mxu0 0.0
    %873 = vmatprep.mubr.f32.mxu0 0.0
    %874 = vmatmul.mubr.f32.gmra.mrb[0].mxu0 %v807
    %v875 = vpop.f32.mrb[0].mxu0
    %v876 = vadd.f32 0.0, %v875
    %v877 = vpop.f32.mrb[0].mxu0
    %878 = vdwg.mxu0
    %v880 = vsel %vm109, %v777, 0
    %882 = vmatprep.subr.mxu0 0.0
    %883 = vmatpush1.msra.mxu0 %v799
    %884 = vmatprep.subr.mxu0 0.0
    %885 = vmatpush1.msra.mxu0 0.0
    %886 = vmatprep.subr.mxu0 0.0
    %887 = vmatpush1.msra.mxu0 0.0
    %888 = vmatprep.subr.mxu0 0.0
    %889 = vmatpush1.msra.mxu0 0.0
    %890 = vmatprep.subr.mxu0 0.0
    %891 = vmatpush1.msra.mxu0 0.0
    %892 = vmatprep.subr.mxu0 0.0
    %893 = vmatpush1.msra.mxu0 0.0
    %894 = vmatprep.subr.mxu0 0.0
    %895 = vmatpush1.msra.mxu0 0.0
    %896 = vmatprep.subr.mxu0 0.0
    %897 = vmatpush1.msra.mxu0 0.0
    %898 = vmatprep.subr.mxu0 0.0
    %899 = vmatpush1.msra.mxu0 0.0
    %900 = vmatprep.subr.mxu0 0.0
    %901 = vmatpush1.msra.mxu0 0.0
    %902 = vmatprep.subr.mxu0 0.0
    %903 = vmatpush1.msra.mxu0 0.0
    %904 = vmatprep.subr.mxu0 0.0
    %905 = vmatpush1.msra.mxu0 0.0
    %906 = vmatprep.subr.mxu0 0.0
    %907 = vmatpush1.msra.mxu0 0.0
    %908 = vmatprep.subr.mxu0 0.0
    %909 = vmatpush1.msra.mxu0 0.0
    %910 = vmatprep.subr.mxu0 0.0
    %911 = vmatpush1.msra.mxu0 0.0
    %912 = vmatprep.subr.mxu0 0.0
    %913 = vmatpush1.msra.mxu0 0.0
    %914 = vmatprep.subr.mxu0 0.0
    %915 = vmatpush1.msra.mxu0 0.0
    %916 = vmatprep.subr.mxu0 0.0
    %917 = vmatpush1.msra.mxu0 0.0
    %918 = vmatprep.subr.mxu0 0.0
    %919 = vmatpush1.msra.mxu0 0.0
    %920 = vmatprep.subr.mxu0 0.0
    %921 = vmatpush1.msra.mxu0 0.0
    %922 = vmatprep.subr.mxu0 0.0
    %923 = vmatpush1.msra.mxu0 0.0
    %924 = vmatprep.subr.mxu0 0.0
    %925 = vmatpush1.msra.mxu0 0.0
    %926 = vmatprep.subr.mxu0 0.0
    %927 = vmatpush1.msra.mxu0 0.0
    %928 = vmatprep.subr.mxu0 0.0
    %929 = vmatpush1.msra.mxu0 0.0
    %930 = vmatprep.subr.mxu0 0.0
    %931 = vmatpush1.msra.mxu0 0.0
    %932 = vmatprep.subr.mxu0 0.0
    %933 = vmatpush1.msra.mxu0 0.0
    %934 = vmatprep.subr.mxu0 0.0
    %935 = vmatpush1.msra.mxu0 0.0
    %936 = vmatprep.subr.mxu0 0.0
    %937 = vmatpush1.msra.mxu0 0.0
    %938 = vmatprep.subr.mxu0 0.0
    %939 = vmatpush1.msra.mxu0 0.0
    %940 = vmatprep.subr.mxu0 0.0
    %941 = vmatpush1.msra.mxu0 0.0
    %942 = vmatprep.subr.mxu0 0.0
    %943 = vmatpush1.msra.mxu0 0.0
    %944 = vmatprep.subr.mxu0 0.0
    %945 = vmatpush1.msra.mxu0 0.0
    %946 = vmatprep.mubr.f32.mxu0 0.0
    %947 = vmatmul.mubr.f32.gmra.mrb[0].mxu0 %v880
    %v948 = vpop.f32.mrb[0].mxu0
    %v949 = vadd.f32 0.0, %v948
    %v950 = vpop.f32.mrb[0].mxu0
    %951 = vdwg.mxu0
    %v953 = vsel %vm109, %v779, 0
    %955 = vmatprep.subr.mxu0 0.0
    %956 = vmatpush1.msra.mxu0 %v800
    %957 = vmatprep.subr.mxu0 0.0
    %958 = vmatpush1.msra.mxu0 0.0
    %959 = vmatprep.subr.mxu0 0.0
    %960 = vmatpush1.msra.mxu0 0.0
    %961 = vmatprep.subr.mxu0 0.0
    %962 = vmatpush1.msra.mxu0 0.0
    %963 = vmatprep.subr.mxu0 0.0
    %964 = vmatpush1.msra.mxu0 0.0
    %965 = vmatprep.subr.mxu0 0.0
    %966 = vmatpush1.msra.mxu0 0.0
    %967 = vmatprep.subr.mxu0 0.0
    %968 = vmatpush1.msra.mxu0 0.0
    %969 = vmatprep.subr.mxu0 0.0
    %970 = vmatpush1.msra.mxu0 0.0
    %971 = vmatprep.subr.mxu0 0.0
    %972 = vmatpush1.msra.mxu0 0.0
    %973 = vmatprep.subr.mxu0 0.0
    %974 = vmatpush1.msra.mxu0 0.0
    %975 = vmatprep.subr.mxu0 0.0
    %976 = vmatpush1.msra.mxu0 0.0
    %977 = vmatprep.subr.mxu0 0.0
    %978 = vmatpush1.msra.mxu0 0.0
    %979 = vmatprep.subr.mxu0 0.0
    %980 = vmatpush1.msra.mxu0 0.0
    %981 = vmatprep.subr.mxu0 0.0
    %982 = vmatpush1.msra.mxu0 0.0
    %983 = vmatprep.subr.mxu0 0.0
    %984 = vmatpush1.msra.mxu0 0.0
    %985 = vmatprep.subr.mxu0 0.0
    %986 = vmatpush1.msra.mxu0 0.0
    %987 = vmatprep.subr.mxu0 0.0
    %988 = vmatpush1.msra.mxu0 0.0
    %989 = vmatprep.subr.mxu0 0.0
    %990 = vmatpush1.msra.mxu0 0.0
    %991 = vmatprep.subr.mxu0 0.0
    %992 = vmatpush1.msra.mxu0 0.0
    %993 = vmatprep.subr.mxu0 0.0
    %994 = vmatpush1.msra.mxu0 0.0
    %995 = vmatprep.subr.mxu0 0.0
    %996 = vmatpush1.msra.mxu0 0.0
    %997 = vmatprep.subr.mxu0 0.0
    %998 = vmatpush1.msra.mxu0 0.0
    %999 = vmatprep.subr.mxu0 0.0
    %1000 = vmatpush1.msra.mxu0 0.0
    %1001 = vmatprep.subr.mxu0 0.0
    %1002 = vmatpush1.msra.mxu0 0.0
    %1003 = vmatprep.subr.mxu0 0.0
    %1004 = vmatpush1.msra.mxu0 0.0
    %1005 = vmatprep.subr.mxu0 0.0
    %1006 = vmatpush1.msra.mxu0 0.0
    %1007 = vmatprep.subr.mxu0 0.0
    %1008 = vmatpush1.msra.mxu0 0.0
    %1009 = vmatprep.subr.mxu0 0.0
    %1010 = vmatpush1.msra.mxu0 0.0
    %1011 = vmatprep.subr.mxu0 0.0
    %1012 = vmatpush1.msra.mxu0 0.0
    %1013 = vmatprep.subr.mxu0 0.0
    %1014 = vmatpush1.msra.mxu0 0.0
    %1015 = vmatprep.subr.mxu0 0.0
    %1016 = vmatpush1.msra.mxu0 0.0
    %1017 = vmatprep.subr.mxu0 0.0
    %1018 = vmatpush1.msra.mxu0 0.0
    %1019 = vmatprep.mubr.f32.mxu0 0.0
    %1020 = vmatmul.mubr.f32.gmra.mrb[0].mxu0 %v953
    %v1021 = vpop.f32.mrb[0].mxu0
    %v1022 = vadd.f32 0.0, %v1021
    %v1023 = vpop.f32.mrb[0].mxu0
    %1024 = vdwg.mxu0
    %v1026 = vsel %vm109, %v781, 0
    %1028 = vmatprep.subr.mxu0 0.0
    %1029 = vmatpush1.msra.mxu0 %v801
    %1030 = vmatprep.subr.mxu0 0.0
    %1031 = vmatpush1.msra.mxu0 0.0
    %1032 = vmatprep.subr.mxu0 0.0
    %1033 = vmatpush1.msra.mxu0 0.0
    %1034 = vmatprep.subr.mxu0 0.0
    %1035 = vmatpush1.msra.mxu0 0.0
    %1036 = vmatprep.subr.mxu0 0.0
    %1037 = vmatpush1.msra.mxu0 0.0
    %1038 = vmatprep.subr.mxu0 0.0
    %1039 = vmatpush1.msra.mxu0 0.0
    %1040 = vmatprep.subr.mxu0 0.0
    %1041 = vmatpush1.msra.mxu0 0.0
    %1042 = vmatprep.subr.mxu0 0.0
    %1043 = vmatpush1.msra.mxu0 0.0
    %1044 = vmatprep.subr.mxu0 0.0
    %1045 = vmatpush1.msra.mxu0 0.0
    %1046 = vmatprep.subr.mxu0 0.0
    %1047 = vmatpush1.msra.mxu0 0.0
    %1048 = vmatprep.subr.mxu0 0.0
    %1049 = vmatpush1.msra.mxu0 0.0
    %1050 = vmatprep.subr.mxu0 0.0
    %1051 = vmatpush1.msra.mxu0 0.0
    %1052 = vmatprep.subr.mxu0 0.0
    %1053 = vmatpush1.msra.mxu0 0.0
    %1054 = vmatprep.subr.mxu0 0.0
    %1055 = vmatpush1.msra.mxu0 0.0
    %1056 = vmatprep.subr.mxu0 0.0
    %1057 = vmatpush1.msra.mxu0 0.0
    %1058 = vmatprep.subr.mxu0 0.0
    %1059 = vmatpush1.msra.mxu0 0.0
    %1060 = vmatprep.subr.mxu0 0.0
    %1061 = vmatpush1.msra.mxu0 0.0
    %1062 = vmatprep.subr.mxu0 0.0
    %1063 = vmatpush1.msra.mxu0 0.0
    %1064 = vmatprep.subr.mxu0 0.0
    %1065 = vmatpush1.msra.mxu0 0.0
    %1066 = vmatprep.subr.mxu0 0.0
    %1067 = vmatpush1.msra.mxu0 0.0
    %1068 = vmatprep.subr.mxu0 0.0
    %1069 = vmatpush1.msra.mxu0 0.0
    %1070 = vmatprep.subr.mxu0 0.0
    %1071 = vmatpush1.msra.mxu0 0.0
    %1072 = vmatprep.subr.mxu0 0.0
    %1073 = vmatpush1.msra.mxu0 0.0
    %1074 = vmatprep.subr.mxu0 0.0
    %1075 = vmatpush1.msra.mxu0 0.0
    %1076 = vmatprep.subr.mxu0 0.0
    %1077 = vmatpush1.msra.mxu0 0.0
    %1078 = vmatprep.subr.mxu0 0.0
    %1079 = vmatpush1.msra.mxu0 0.0
    %1080 = vmatprep.subr.mxu0 0.0
    %1081 = vmatpush1.msra.mxu0 0.0
    %1082 = vmatprep.subr.mxu0 0.0
    %1083 = vmatpush1.msra.mxu0 0.0
    %1084 = vmatprep.subr.mxu0 0.0
    %1085 = vmatpush1.msra.mxu0 0.0
    %1086 = vmatprep.subr.mxu0 0.0
    %1087 = vmatpush1.msra.mxu0 0.0
    %1088 = vmatprep.subr.mxu0 0.0
    %1089 = vmatpush1.msra.mxu0 0.0
    %1090 = vmatprep.subr.mxu0 0.0
    %1091 = vmatpush1.msra.mxu0 0.0
    %1092 = vmatprep.mubr.f32.mxu0 0.0
    %1093 = vmatmul.mubr.f32.gmra.mrb[0].mxu0 %v1026
    %v1094 = vpop.f32.mrb[0].mxu0
    %v1095 = vadd.f32 0.0, %v1094
    %v1096 = vpop.f32.mrb[0].mxu0
    %1097 = vdwg.mxu0
    %v1099 = vsel %vm109, %v783, 0
    %1101 = vmatprep.subr.mxu0 0.0
    %1102 = vmatpush1.msra.mxu0 %v802
    %1103 = vmatprep.subr.mxu0 0.0
    %1104 = vmatpush1.msra.mxu0 0.0
    %1105 = vmatprep.subr.mxu0 0.0
    %1106 = vmatpush1.msra.mxu0 0.0
    %1107 = vmatprep.subr.mxu0 0.0
    %1108 = vmatpush1.msra.mxu0 0.0
    %1109 = vmatprep.subr.mxu0 0.0
    %1110 = vmatpush1.msra.mxu0 0.0
    %1111 = vmatprep.subr.mxu0 0.0
    %1112 = vmatpush1.msra.mxu0 0.0
    %1113 = vmatprep.subr.mxu0 0.0
    %1114 = vmatpush1.msra.mxu0 0.0
    %1115 = vmatprep.subr.mxu0 0.0
    %1116 = vmatpush1.msra.mxu0 0.0
    %1117 = vmatprep.subr.mxu0 0.0
    %1118 = vmatpush1.msra.mxu0 0.0
    %1119 = vmatprep.subr.mxu0 0.0
    %1120 = vmatpush1.msra.mxu0 0.0
    %1121 = vmatprep.subr.mxu0 0.0
    %1122 = vmatpush1.msra.mxu0 0.0
    %1123 = vmatprep.subr.mxu0 0.0
    %1124 = vmatpush1.msra.mxu0 0.0
    %1125 = vmatprep.subr.mxu0 0.0
    %1126 = vmatpush1.msra.mxu0 0.0
    %1127 = vmatprep.subr.mxu0 0.0
    %1128 = vmatpush1.msra.mxu0 0.0
    %1129 = vmatprep.subr.mxu0 0.0
    %1130 = vmatpush1.msra.mxu0 0.0
    %1131 = vmatprep.subr.mxu0 0.0
    %1132 = vmatpush1.msra.mxu0 0.0
    %1133 = vmatprep.subr.mxu0 0.0
    %1134 = vmatpush1.msra.mxu0 0.0
    %1135 = vmatprep.subr.mxu0 0.0
    %1136 = vmatpush1.msra.mxu0 0.0
    %1137 = vmatprep.subr.mxu0 0.0
    %1138 = vmatpush1.msra.mxu0 0.0
    %1139 = vmatprep.subr.mxu0 0.0
    %1140 = vmatpush1.msra.mxu0 0.0
    %1141 = vmatprep.subr.mxu0 0.0
    %1142 = vmatpush1.msra.mxu0 0.0
    %1143 = vmatprep.subr.mxu0 0.0
    %1144 = vmatpush1.msra.mxu0 0.0
    %1145 = vmatprep.subr.mxu0 0.0
    %1146 = vmatpush1.msra.mxu0 0.0
    %1147 = vmatprep.subr.mxu0 0.0
    %1148 = vmatpush1.msra.mxu0 0.0
    %1149 = vmatprep.subr.mxu0 0.0
    %1150 = vmatpush1.msra.mxu0 0.0
    %1151 = vmatprep.subr.mxu0 0.0
    %1152 = vmatpush1.msra.mxu0 0.0
    %1153 = vmatprep.subr.mxu0 0.0
    %1154 = vmatpush1.msra.mxu0 0.0
    %1155 = vmatprep.subr.mxu0 0.0
    %1156 = vmatpush1.msra.mxu0 0.0
    %1157 = vmatprep.subr.mxu0 0.0
    %1158 = vmatpush1.msra.mxu0 0.0
    %1159 = vmatprep.subr.mxu0 0.0
    %1160 = vmatpush1.msra.mxu0 0.0
    %1161 = vmatprep.subr.mxu0 0.0
    %1162 = vmatpush1.msra.mxu0 0.0
    %1163 = vmatprep.subr.mxu0 0.0
    %1164 = vmatpush1.msra.mxu0 0.0
    %1165 = vmatprep.mubr.f32.mxu0 0.0
    %1166 = vmatmul.mubr.f32.gmra.mrb[0].mxu0 %v1099
    %v1167 = vpop.f32.mrb[0].mxu0
    %v1168 = vadd.f32 0.0, %v1167
    %v1169 = vpop.f32.mrb[0].mxu0
    %1170 = vdwg.mxu0
    %v1172 = vsel %vm109, %v785, 0
    %1174 = vmatprep.subr.mxu0 0.0
    %1175 = vmatpush1.msra.mxu0 %v803
    %1176 = vmatprep.subr.mxu0 0.0
    %1177 = vmatpush1.msra.mxu0 0.0
    %1178 = vmatprep.subr.mxu0 0.0
    %1179 = vmatpush1.msra.mxu0 0.0
    %1180 = vmatprep.subr.mxu0 0.0
    %1181 = vmatpush1.msra.mxu0 0.0
    %1182 = vmatprep.subr.mxu0 0.0
    %1183 = vmatpush1.msra.mxu0 0.0
    %1184 = vmatprep.subr.mxu0 0.0
    %1185 = vmatpush1.msra.mxu0 0.0
    %1186 = vmatprep.subr.mxu0 0.0
    %1187 = vmatpush1.msra.mxu0 0.0
    %1188 = vmatprep.subr.mxu0 0.0
    %1189 = vmatpush1.msra.mxu0 0.0
    %1190 = vmatprep.subr.mxu0 0.0
    %1191 = vmatpush1.msra.mxu0 0.0
    %1192 = vmatprep.subr.mxu0 0.0
    %1193 = vmatpush1.msra.mxu0 0.0
    %1194 = vmatprep.subr.mxu0 0.0
    %1195 = vmatpush1.msra.mxu0 0.0
    %1196 = vmatprep.subr.mxu0 0.0
    %1197 = vmatpush1.msra.mxu0 0.0
    %1198 = vmatprep.subr.mxu0 0.0
    %1199 = vmatpush1.msra.mxu0 0.0
    %1200 = vmatprep.subr.mxu0 0.0
    %1201 = vmatpush1.msra.mxu0 0.0
    %1202 = vmatprep.subr.mxu0 0.0
    %1203 = vmatpush1.msra.mxu0 0.0
    %1204 = vmatprep.subr.mxu0 0.0
    %1205 = vmatpush1.msra.mxu0 0.0
    %1206 = vmatprep.subr.mxu0 0.0
    %1207 = vmatpush1.msra.mxu0 0.0
    %1208 = vmatprep.subr.mxu0 0.0
    %1209 = vmatpush1.msra.mxu0 0.0
    %1210 = vmatprep.subr.mxu0 0.0
    %1211 = vmatpush1.msra.mxu0 0.0
    %1212 = vmatprep.subr.mxu0 0.0
    %1213 = vmatpush1.msra.mxu0 0.0
    %1214 = vmatprep.subr.mxu0 0.0
    %1215 = vmatpush1.msra.mxu0 0.0
    %1216 = vmatprep.subr.mxu0 0.0
    %1217 = vmatpush1.msra.mxu0 0.0
    %1218 = vmatprep.subr.mxu0 0.0
    %1219 = vmatpush1.msra.mxu0 0.0
    %1220 = vmatprep.subr.mxu0 0.0
    %1221 = vmatpush1.msra.mxu0 0.0
    %1222 = vmatprep.subr.mxu0 0.0
    %1223 = vmatpush1.msra.mxu0 0.0
    %1224 = vmatprep.subr.mxu0 0.0
    %1225 = vmatpush1.msra.mxu0 0.0
    %1226 = vmatprep.subr.mxu0 0.0
    %1227 = vmatpush1.msra.mxu0 0.0
    %1228 = vmatprep.subr.mxu0 0.0
    %1229 = vmatpush1.msra.mxu0 0.0
    %1230 = vmatprep.subr.mxu0 0.0
    %1231 = vmatpush1.msra.mxu0 0.0
    %1232 = vmatprep.subr.mxu0 0.0
    %1233 = vmatpush1.msra.mxu0 0.0
    %1234 = vmatprep.subr.mxu0 0.0
    %1235 = vmatpush1.msra.mxu0 0.0
    %1236 = vmatprep.subr.mxu0 0.0
    %1237 = vmatpush1.msra.mxu0 0.0
    %1238 = vmatprep.mubr.f32.mxu0 0.0
    %1239 = vmatmul.mubr.f32.gmra.mrb[0].mxu0 %v1172
    %v1240 = vpop.f32.mrb[0].mxu0
    %v1241 = vadd.f32 0.0, %v1240
    %v1242 = vpop.f32.mrb[0].mxu0
    %1243 = vdwg.mxu0
    %v1245 = vsel %vm109, %v787, 0
    %1247 = vmatprep.subr.mxu0 0.0
    %1248 = vmatpush1.msra.mxu0 %v804
    %1249 = vmatprep.subr.mxu0 0.0
    %1250 = vmatpush1.msra.mxu0 0.0
    %1251 = vmatprep.subr.mxu0 0.0
    %1252 = vmatpush1.msra.mxu0 0.0
    %1253 = vmatprep.subr.mxu0 0.0
    %1254 = vmatpush1.msra.mxu0 0.0
    %1255 = vmatprep.subr.mxu0 0.0
    %1256 = vmatpush1.msra.mxu0 0.0
    %1257 = vmatprep.subr.mxu0 0.0
    %1258 = vmatpush1.msra.mxu0 0.0
    %1259 = vmatprep.subr.mxu0 0.0
    %1260 = vmatpush1.msra.mxu0 0.0
    %1261 = vmatprep.subr.mxu0 0.0
    %1262 = vmatpush1.msra.mxu0 0.0
    %1263 = vmatprep.subr.mxu0 0.0
    %1264 = vmatpush1.msra.mxu0 0.0
    %1265 = vmatprep.subr.mxu0 0.0
    %1266 = vmatpush1.msra.mxu0 0.0
    %1267 = vmatprep.subr.mxu0 0.0
    %1268 = vmatpush1.msra.mxu0 0.0
    %1269 = vmatprep.subr.mxu0 0.0
    %1270 = vmatpush1.msra.mxu0 0.0
    %1271 = vmatprep.subr.mxu0 0.0
    %1272 = vmatpush1.msra.mxu0 0.0
    %1273 = vmatprep.subr.mxu0 0.0
    %1274 = vmatpush1.msra.mxu0 0.0
    %1275 = vmatprep.subr.mxu0 0.0
    %1276 = vmatpush1.msra.mxu0 0.0
    %1277 = vmatprep.subr.mxu0 0.0
    %1278 = vmatpush1.msra.mxu0 0.0
    %1279 = vmatprep.subr.mxu0 0.0
    %1280 = vmatpush1.msra.mxu0 0.0
    %1281 = vmatprep.subr.mxu0 0.0
    %1282 = vmatpush1.msra.mxu0 0.0
    %1283 = vmatprep.subr.mxu0 0.0
    %1284 = vmatpush1.msra.mxu0 0.0
    %1285 = vmatprep.subr.mxu0 0.0
    %1286 = vmatpush1.msra.mxu0 0.0
    %1287 = vmatprep.subr.mxu0 0.0
    %1288 = vmatpush1.msra.mxu0 0.0
    %1289 = vmatprep.subr.mxu0 0.0
    %1290 = vmatpush1.msra.mxu0 0.0
    %1291 = vmatprep.subr.mxu0 0.0
    %1292 = vmatpush1.msra.mxu0 0.0
    %1293 = vmatprep.subr.mxu0 0.0
    %1294 = vmatpush1.msra.mxu0 0.0
    %1295 = vmatprep.subr.mxu0 0.0
    %1296 = vmatpush1.msra.mxu0 0.0
    %1297 = vmatprep.subr.mxu0 0.0
    %1298 = vmatpush1.msra.mxu0 0.0
    %1299 = vmatprep.subr.mxu0 0.0
    %1300 = vmatpush1.msra.mxu0 0.0
    %1301 = vmatprep.subr.mxu0 0.0
    %1302 = vmatpush1.msra.mxu0 0.0
    %1303 = vmatprep.subr.mxu0 0.0
    %1304 = vmatpush1.msra.mxu0 0.0
    %1305 = vmatprep.subr.mxu0 0.0
    %1306 = vmatpush1.msra.mxu0 0.0
    %1307 = vmatprep.subr.mxu0 0.0
    %1308 = vmatpush1.msra.mxu0 0.0
    %1309 = vmatprep.subr.mxu0 0.0
    %1310 = vmatpush1.msra.mxu0 0.0
    %1311 = vmatprep.mubr.f32.mxu0 0.0
    %1312 = vmatmul.mubr.f32.gmra.mrb[0].mxu0 %v1245
    %v1313 = vpop.f32.mrb[0].mxu0
    %v1314 = vadd.f32 0.0, %v1313
    %v1315 = vpop.f32.mrb[0].mxu0
    %1316 = vdwg.mxu0
    %v1318 = vsel %vm109, %v789, 0
    %1320 = vmatprep.subr.mxu0 0.0
    %1321 = vmatpush1.msra.mxu0 %v805
    %1322 = vmatprep.subr.mxu0 0.0
    %1323 = vmatpush1.msra.mxu0 0.0
    %1324 = vmatprep.subr.mxu0 0.0
    %1325 = vmatpush1.msra.mxu0 0.0
    %1326 = vmatprep.subr.mxu0 0.0
    %1327 = vmatpush1.msra.mxu0 0.0
    %1328 = vmatprep.subr.mxu0 0.0
    %1329 = vmatpush1.msra.mxu0 0.0
    %1330 = vmatprep.subr.mxu0 0.0
    %1331 = vmatpush1.msra.mxu0 0.0
    %1332 = vmatprep.subr.mxu0 0.0
    %1333 = vmatpush1.msra.mxu0 0.0
    %1334 = vmatprep.subr.mxu0 0.0
    %1335 = vmatpush1.msra.mxu0 0.0
    %1336 = vmatprep.subr.mxu0 0.0
    %1337 = vmatpush1.msra.mxu0 0.0
    %1338 = vmatprep.subr.mxu0 0.0
    %1339 = vmatpush1.msra.mxu0 0.0
    %1340 = vmatprep.subr.mxu0 0.0
    %1341 = vmatpush1.msra.mxu0 0.0
    %1342 = vmatprep.subr.mxu0 0.0
    %1343 = vmatpush1.msra.mxu0 0.0
    %1344 = vmatprep.subr.mxu0 0.0
    %1345 = vmatpush1.msra.mxu0 0.0
    %1346 = vmatprep.subr.mxu0 0.0
    %1347 = vmatpush1.msra.mxu0 0.0
    %1348 = vmatprep.subr.mxu0 0.0
    %1349 = vmatpush1.msra.mxu0 0.0
    %1350 = vmatprep.subr.mxu0 0.0
    %1351 = vmatpush1.msra.mxu0 0.0
    %1352 = vmatprep.subr.mxu0 0.0
    %1353 = vmatpush1.msra.mxu0 0.0
    %1354 = vmatprep.subr.mxu0 0.0
    %1355 = vmatpush1.msra.mxu0 0.0
    %1356 = vmatprep.subr.mxu0 0.0
    %1357 = vmatpush1.msra.mxu0 0.0
    %1358 = vmatprep.subr.mxu0 0.0
    %1359 = vmatpush1.msra.mxu0 0.0
    %1360 = vmatprep.subr.mxu0 0.0
    %1361 = vmatpush1.msra.mxu0 0.0
    %1362 = vmatprep.subr.mxu0 0.0
    %1363 = vmatpush1.msra.mxu0 0.0
    %1364 = vmatprep.subr.mxu0 0.0
    %1365 = vmatpush1.msra.mxu0 0.0
    %1366 = vmatprep.subr.mxu0 0.0
    %1367 = vmatpush1.msra.mxu0 0.0
    %1368 = vmatprep.subr.mxu0 0.0
    %1369 = vmatpush1.msra.mxu0 0.0
    %1370 = vmatprep.subr.mxu0 0.0
    %1371 = vmatpush1.msra.mxu0 0.0
    %1372 = vmatprep.subr.mxu0 0.0
    %1373 = vmatpush1.msra.mxu0 0.0
    %1374 = vmatprep.subr.mxu0 0.0
    %1375 = vmatpush1.msra.mxu0 0.0
    %1376 = vmatprep.subr.mxu0 0.0
    %1377 = vmatpush1.msra.mxu0 0.0
    %1378 = vmatprep.subr.mxu0 0.0
    %1379 = vmatpush1.msra.mxu0 0.0
    %1380 = vmatprep.subr.mxu0 0.0
    %1381 = vmatpush1.msra.mxu0 0.0
    %1382 = vmatprep.subr.mxu0 0.0
    %1383 = vmatpush1.msra.mxu0 0.0
    %1384 = vmatprep.mubr.f32.mxu0 0.0
    %1385 = vmatmul.mubr.f32.gmra.mrb[0].mxu0 %v1318
    %v1386 = vpop.f32.mrb[0].mxu0
    %v1387 = vadd.f32 0.0, %v1386
    %v1388 = vpop.f32.mrb[0].mxu0
    %1389 = vdwg.mxu0
    %1390 = vst.msk [vmem:[#allocation10] sm:$0xff] %vm109, %v876
    %1391 = vst.msk [vmem:[#allocation10 + $0x8] sm:$0xff] %vm109, %v949
    %1392 = vst.msk [vmem:[#allocation10 + $0x10] sm:$0xff] %vm109, %v1022
    %1393 = vst.msk [vmem:[#allocation10 + $0x18] sm:$0xff] %vm109, %v1095
    %1394 = vst.msk [vmem:[#allocation10 + $0x20] sm:$0xff] %vm109, %v1168
    %1395 = vst.msk [vmem:[#allocation10 + $0x28] sm:$0xff] %vm109, %v1241
    %1396 = vst.msk [vmem:[#allocation10 + $0x30] sm:$0xff] %vm109, %v1314
    %1397 = vst.msk [vmem:[#allocation10 + $0x38] sm:$0xff] %vm109, %v1387
    // Predicated region
    $region34: #{tpu_custom_call.1} parent=1 // pred_check
      _
    $region35: #{tpu_custom_call.1} parent=1 // pred_check_branch
      %1399 = sbr.rel (0) target = $region37
    $region36: #{tpu_custom_call.1} parent=1 // pred_region
      %s1401 = ssub.s32 1024, 1024
      %1402 = vsyncadd [#allocation4], %s1401
      %s1403 = sshll.u32 [#allocation10], 4
      %s1404 = int_to_ptr.vmem [resolvable:$true] %s1403
      %1409 = dma.vmem_to_hbm [thread:$0]  %s1404, 1024, %s4, [#allocation4], 128, 128, 8
    $region37: #{tpu_custom_call.1} parent=1 // pred_fallthru
      _
    // Predicated region
    $region38: #{tpu_custom_call.1} parent=1 // pred_check
      _
    $region39: #{tpu_custom_call.1} parent=1 // pred_check_branch
      %1411 = sbr.rel (0) target = $region41
    $region40: #{tpu_custom_call.1} parent=1 // pred_region
      %s1413 = ssub.s32 1024, 1024
      %1414 = vsyncadd [#allocation12], %s1413
      %s1415 = sshll.u32 [#allocation11], 4
      %s1416 = int_to_ptr.vmem [resolvable:$true] %s1415
      %1421 = dma.vmem_to_hbm [thread:$0]  %s1416, 1024, %s5, [#allocation12], 128, 128, 8
    $region41: #{tpu_custom_call.1} parent=1 // pred_fallthru
      _
    // Predicated region
    $region42: #{tpu_custom_call.1} parent=1 // pred_check
      _
    $region43: #{tpu_custom_call.1} parent=1 // pred_check_branch
      %1423 = sbr.rel (0) target = $region45
    $region44: #{tpu_custom_call.1} parent=1 // pred_region
      %s1425 = ssub.s32 1024, 1024
      %1426 = vsyncadd [#allocation12], %s1425
      %s1427 = sshll.u32 [#allocation13], 4
      %s1428 = int_to_ptr.vmem [resolvable:$true] %s1427
      %1433 = dma.vmem_to_hbm [thread:$0]  %s1428, 1024, %s6, [#allocation12], 128, 128, 8
    $region45: #{tpu_custom_call.1} parent=1 // pred_fallthru
      _
    // Predicated region
    $region46: #{tpu_custom_call.1} parent=1 // pred_check
      _
    $region47: #{tpu_custom_call.1} parent=1 // pred_check_branch
      %1435 = sbr.rel (0) target = $region49
    $region48: #{tpu_custom_call.1} parent=1 // pred_region
      %1436 = dma.done [#allocation4], 1024
    $region49: #{tpu_custom_call.1} parent=1 // pred_fallthru
      _
    // Predicated region
    $region50: #{tpu_custom_call.1} parent=1 // pred_check
      _
    $region51: #{tpu_custom_call.1} parent=1 // pred_check_branch
      %1438 = sbr.rel (0) target = $region53
    $region52: #{tpu_custom_call.1} parent=1 // pred_region
      %1439 = dma.done [#allocation12], 1024
    $region53: #{tpu_custom_call.1} parent=1 // pred_fallthru
      _
    // Predicated region
    $region54: #{tpu_custom_call.1} parent=1 // pred_check
      _
    $region55: #{tpu_custom_call.1} parent=1 // pred_check_branch
      %1441 = sbr.rel (0) target = $region57
    $region56: #{tpu_custom_call.1} parent=1 // pred_region
      %1442 = dma.done [#allocation12], 1024
    $region57: #{tpu_custom_call.1} parent=1 // pred_fallthru
      _
    %1443 = vsyncpa [#allocation3], 1
    %1444 = vsyncpa [#allocation6], 1
    %1445 = vsyncpa [#allocation9], 1
    %1446 = vsyncpa [#allocation4], 1
    %1447 = vsyncpa [#allocation12], 1

</llo_original>
